<compile_context>
chip_gen: v7x
topology: tpu7x:2x2x1
jax: 0.10.0
libtpu: 0.0.40
codegen_flags: <defaults>
</compile_context>

<pallas_src>
import functools

import jax
import jax.numpy as jnp
from jax import lax
from jax.experimental import pallas as pl
from jax.experimental.pallas import tpu as pltpu


# -----------------------------------------------------------------------------
# Fused kernel: time_step x (MultiHeadTripletAttention -> CELU -> GRU -> LN)
# -----------------------------------------------------------------------------
def block_kernel(x_ref, ea_ref, s_ref, t_ref,
                 wn_ref, we_ref, pwi_ref, pwj_ref, pwe_ref, pt_ref,
                 ws_ref, b_ref, wgru_ref, bgru_ref, gamma_ref, beta_ref,
                 out_ref,
                 *, heads, channels, time_step, neg_slope, ln_eps):
    f32 = jnp.float32
    bf16 = jnp.bfloat16
    C = channels
    H = heads
    N = x_ref.shape[0]

    # ---------------- loop-invariant loads / precompute (hoisted) ----------------
    S = s_ref[...]                               # [E, N] bf16 one-hot (source j)
    T = t_ref[...]                               # [E, N] bf16 one-hot (dest   i)
    # arithmetic mask bias: 0 on edges, -1e30 elsewhere (bf16, single buffer)
    negbias = (T - 1.0) * 1e30                   # [E, N] bf16

    wn = wn_ref[...]                             # [C, H*C]   bf16
    ws = ws_ref[...]                             # [H*C, C]   bf16
    pwi = pwi_ref[...]                           # [H*C, H]   f32 (att_i folded)
    pwj = pwj_ref[...]                           # [H*C, H]   f32 (att_j folded)
    pt = pt_ref[...]                             # [H, H*C]   bf16 head->lanes
    wgru = wgru_ref[...]                         # [2C, 6C]   bf16 block-diag

    # hoisted broadcasts (JAX does not CSE broadcast_in_dim inside the loop)
    bias_b = jnp.broadcast_to(b_ref[...], (N, C))
    bgru_b = jnp.broadcast_to(bgru_ref[...], (N, 6 * C))
    gamma_b = jnp.broadcast_to(gamma_ref[...], (N, C))
    beta_b = jnp.broadcast_to(beta_ref[...], (N, C))

    # edge projection + its logit contribution are x-independent -> hoisted
    ep = jnp.dot(ea_ref[...], we_ref[...], preferred_element_type=f32)   # [E, H*C]
    alpha_e = jnp.dot(ep, pwe_ref[...], preferred_element_type=f32)      # [E, H]

    def step(_, carry):
        xv, hv = carry

        # ---------------- MultiHeadTripletAttention ----------------
        xp = jnp.dot(xv.astype(bf16), wn, preferred_element_type=f32)    # [N, H*C]
        xp16 = xp.astype(bf16)
        xj = jnp.dot(S, xp16, preferred_element_type=f32)                # [E, H*C]

        # per-head logits: alpha = <xi,w_i> + <e,w_e> + <xj,w_j>, reduced per head
        ai_n = jnp.dot(xp, pwi, preferred_element_type=f32)              # [N, H]
        aei = jnp.dot(T, ai_n.astype(bf16), preferred_element_type=f32)  # [E, H]
        aej = jnp.dot(xj, pwj, preferred_element_type=f32)               # [E, H]
        alpha = aei + aej + alpha_e                                      # [E, H]
        alpha = jnp.where(alpha > 0, alpha, neg_slope * alpha)  # leaky_relu(0.2)
        # NOTE: negative_slope=0.2 matches MultiHeadTripletAttention's default.

        # -------- exact segment softmax over edges sharing a destination --------
        nmax = [jnp.max(alpha[:, h:h + 1] * T + negbias, axis=0, keepdims=True)
                for h in range(H)]                                        # H x [1,N]
        node_max = jnp.concatenate(nmax, axis=0)                          # [H, N]
        max_edge = lax.dot_general(T, node_max.astype(bf16),
                                   (((1,), (1,)), ((), ())),
                                   preferred_element_type=f32)            # [E, H]
        ex = jnp.exp(alpha - max_edge)                                    # [E, H]
        sum_node = lax.dot_general(ex.astype(bf16), T,
                                   (((0,), (0,)), ((), ())),
                                   preferred_element_type=f32)            # [H, N]
        inv_node = pl.reciprocal(sum_node + 1e-16, approx=True)           # [H, N]
        inv_edge = lax.dot_general(T, inv_node.astype(bf16),
                                   (((1,), (1,)), ((), ())),
                                   preferred_element_type=f32)            # [E, H]
        a_norm = ex * inv_edge                                            # [E, H]

        # per-head weight -> H*C lanes via one-hot matmul (no lane shuffles)
        a_full = jnp.dot(a_norm.astype(bf16), pt,
                         preferred_element_type=f32)                      # [E, H*C]
        msg = a_full * ep * xj                                            # [E, H*C]

        # scatter-add messages to destination nodes
        aggr = lax.dot_general(T, msg.astype(bf16),
                               (((0,), (0,)), ((), ())),
                               preferred_element_type=f32)                # [N, H*C]

        # update(): [N,H*C] @ [H*C,C] + bias
        out = jnp.dot(aggr.astype(bf16), ws,
                      preferred_element_type=f32) + bias_b                # [N, C]

        # CELU (alpha = 1)
        m = jnp.maximum(out, 0.0) + jnp.exp(jnp.minimum(out, 0.0)) - 1.0

        # ---------------- single-step GRU (one fused matmul) ----------------
        mh = jnp.concatenate([m, hv], axis=1).astype(bf16)                # [N, 2C]
        g = jnp.dot(mh, wgru, preferred_element_type=f32) + bgru_b        # [N, 6C]
        gi = g[:, :3 * C]
        gh = g[:, 3 * C:]
        rz = jax.nn.sigmoid(gi[:, :2 * C] + gh[:, :2 * C])                # fused r,z
        r = rz[:, :C]
        z = rz[:, C:]
        n = jnp.tanh(gi[:, 2 * C:] + r * gh[:, 2 * C:])
        hv_new = (1.0 - z) * n + z * hv

        # ---------------- LayerNorm (biased var, eps=1e-5) ----------------
        mu = jnp.mean(hv_new, axis=1, keepdims=True)
        var = jnp.mean((hv_new - mu) ** 2, axis=1, keepdims=True)
        xv_new = (hv_new - mu) * lax.rsqrt(var + ln_eps) * gamma_b + beta_b
        return xv_new, hv_new

    xv0 = x_ref[...]                                                      # [N, C]
    xv, _ = lax.fori_loop(0, time_step, step, (xv0, xv0))
    out_ref[...] = xv


# -----------------------------------------------------------------------------
# Python wrapper (glue): builds one-hots / folded weights, single pallas_call
# -----------------------------------------------------------------------------
def _vmem_limit_bytes():
    cap = 128 * 1024 * 1024
    try:
        cap = int(pltpu.get_tpu_info().vmem_capacity_bytes)
    except Exception:
        pass
    # never request the whole per-core VMEM (v7x has only 64 MiB); keep headroom
    return int(min(cap - cap // 4, 96 * 1024 * 1024))


def block_forward(x, edge_index, edge_attr, params, *, heads=3, time_step=3):
    N, C = x.shape
    H = heads
    f32, bf16 = jnp.float32, jnp.bfloat16

    # dense one-hot gather/scatter matrices (0/1 exact in bf16).
    # TODO(synk): for medium/large graphs replace the dense one-hots with
    # scalar-prefetched edge_index gathers + a node/edge-block grid marked
    # "parallel" (also enables the v7x dual-TensorCore split).
    S = jax.nn.one_hot(edge_index[0], N, dtype=bf16)   # [E, N] source  j
    T = jax.nn.one_hot(edge_index[1], N, dtype=bf16)   # [E, N] dest    i

    # fold the triplet-attention weights into head-pooling matrices so the
    # per-head channel reduction is a small matmul (removes the xi gather).
    w_att = params["w_att"]                                             # [H, 3C]
    head_hot = (jnp.arange(H)[:, None] ==
                jnp.repeat(jnp.arange(H), C)[None, :]).astype(f32)      # [H, H*C]
    pw_i = head_hot.T * w_att[:, 0:C].reshape(H * C)[:, None]           # [H*C, H]
    pw_e = head_hot.T * w_att[:, C:2 * C].reshape(H * C)[:, None]
    pw_j = head_hot.T * w_att[:, 2 * C:3 * C].reshape(H * C)[:, None]
    Pt16 = head_hot.astype(bf16)                                        # [H, H*C]

    # fused GRU: block-diagonal weight + concatenated bias
    w_gru = jnp.zeros((2 * C, 6 * C), f32)
    w_gru = w_gru.at[:C, :3 * C].set(params["wih_t"])
    w_gru = w_gru.at[C:, 3 * C:].set(params["whh_t"])
    b_gru = jnp.concatenate([params["b_ih"], params["b_hh"]], axis=1)   # [1, 6C]

    vmem = pl.BlockSpec(memory_space=pltpu.MemorySpace.VMEM)
    kernel = functools.partial(block_kernel, heads=H, channels=C,
                               time_step=time_step, neg_slope=0.2, ln_eps=1e-5)

    return pl.pallas_call(
        kernel,
        out_shape=jax.ShapeDtypeStruct((N, C), f32),
        in_specs=[vmem] * 16,
        out_specs=vmem,
        compiler_params=pltpu.CompilerParams(
            vmem_limit_bytes=_vmem_limit_bytes()),
    )(x.astype(f32), edge_attr.astype(bf16), S, T,
      params["w_node"].astype(bf16), params["w_edge"].astype(bf16),
      pw_i, pw_j, pw_e, Pt16,
      params["w_scale"].astype(bf16), params["bias"],
      w_gru.astype(bf16), b_gru,
      params["gamma"], params["beta"])


# -----------------------------------------------------------------------------
# Deterministic parameter init (shapes follow the torch module __init__)
# -----------------------------------------------------------------------------
def init_params(key, dim, edge_dim, heads):
    ks = jax.random.split(key, 8)

    def kaiming(k, shape):
        fan_in = shape[1]
        bound = (6.0 / fan_in) ** 0.5
        return jax.random.uniform(k, shape, jnp.float32, -bound, bound)

    def gru_u(k, shape):
        bound = 1.0 / (dim ** 0.5)
        return jax.random.uniform(k, shape, jnp.float32, -bound, bound)

    return {
        # MultiHeadTripletAttention
        "w_node": kaiming(ks[0], (dim, heads * dim)),
        "w_edge": kaiming(ks[1], (edge_dim, heads * dim)),
        "w_att": kaiming(ks[2], (heads, 3 * dim)),        # (1, H, 3C) squeezed
        "w_scale": kaiming(ks[3], (heads * dim, dim)),
        "bias": jnp.zeros((1, dim), jnp.float32),
        # GRU(dim, dim) — transposed weights so the kernel does x @ W^T
        "wih_t": gru_u(ks[4], (3 * dim, dim)).T,          # [dim, 3*dim]
        "whh_t": gru_u(ks[5], (3 * dim, dim)).T,          # [dim, 3*dim]
        "b_ih": gru_u(ks[6], (1, 3 * dim)),
        "b_hh": gru_u(ks[7], (1, 3 * dim)),
        # LayerNorm(dim)
        "gamma": jnp.ones((1, dim), jnp.float32),
        "beta": jnp.zeros((1, dim), jnp.float32),
    }


if __name__ == "__main__":
    N, DIM, EDGE_DIM, E, HEADS, TIME_STEP = 8, 8, 6, 16, 3, 3

    root = jax.random.PRNGKey(0)
    k_x, k_e, k_src, k_dst, k_p = jax.random.split(root, 5)

    x = jax.random.normal(k_x, (N, DIM), jnp.float32)
    edge_attr = jax.random.normal(k_e, (E, EDGE_DIM), jnp.float32)
    edge_index = jnp.stack([
        jax.random.randint(k_src, (E,), 0, N),   # source nodes (j)
        jax.random.randint(k_dst, (E,), 0, N),   # destination nodes (i)
    ], axis=0)

    params = init_params(k_p, DIM, EDGE_DIM, HEADS)

    out = block_forward(x, edge_index, edge_attr, params,
                        heads=HEADS, time_step=TIME_STEP)
    out = jax.block_until_ready(out)
    assert out.shape == (N, DIM) and jnp.all(jnp.isfinite(out))
    print("KERNEL_OK")
</pallas_src>

<mosaic_0001>
module attributes {stable_mosaic.version = 11 : i64} {
  func.func @block_kernel(%arg0: memref<8x8xf32, #tpu.memory_space<vmem>>, %arg1: memref<16x6xbf16, #tpu.memory_space<vmem>>, %arg2: memref<16x8xbf16, #tpu.memory_space<vmem>>, %arg3: memref<16x8xbf16, #tpu.memory_space<vmem>>, %arg4: memref<8x24xbf16, #tpu.memory_space<vmem>>, %arg5: memref<6x24xbf16, #tpu.memory_space<vmem>>, %arg6: memref<24x3xf32, #tpu.memory_space<vmem>>, %arg7: memref<24x3xf32, #tpu.memory_space<vmem>>, %arg8: memref<24x3xf32, #tpu.memory_space<vmem>>, %arg9: memref<3x24xbf16, #tpu.memory_space<vmem>>, %arg10: memref<24x8xbf16, #tpu.memory_space<vmem>>, %arg11: memref<1x8xf32, #tpu.memory_space<vmem>>, %arg12: memref<16x48xbf16, #tpu.memory_space<vmem>>, %arg13: memref<1x48xf32, #tpu.memory_space<vmem>>, %arg14: memref<1x8xf32, #tpu.memory_space<vmem>>, %arg15: memref<1x8xf32, #tpu.memory_space<vmem>>, %arg16: memref<8x8xf32, #tpu.memory_space<vmem>>) attributes {dimension_semantics = [], scalar_prefetch = 0 : i64, scratch_operands = 0 : i64, tpu.core_type = #tpu.core_type<tc>} {
    %c0 = arith.constant 0 : index
    %c0_0 = arith.constant 0 : index
    %0 = vector.load %arg2[%c0, %c0_0] : memref<16x8xbf16, #tpu.memory_space<vmem>>, vector<16x8xbf16>
    %c0_1 = arith.constant 0 : index
    %c0_2 = arith.constant 0 : index
    %1 = vector.load %arg3[%c0_1, %c0_2] : memref<16x8xbf16, #tpu.memory_space<vmem>>, vector<16x8xbf16>
    %cst = arith.constant 1.000000e+00 : bf16
    %2 = vector.broadcast %cst : bf16 to vector<16x8xbf16>
    %3 = arith.subf %1, %2 : vector<16x8xbf16>
    %cst_3 = arith.constant 1.000260e+30 : bf16
    %4 = vector.broadcast %cst_3 : bf16 to vector<16x8xbf16>
    %5 = arith.mulf %3, %4 : vector<16x8xbf16>
    %c0_4 = arith.constant 0 : index
    %c0_5 = arith.constant 0 : index
    %6 = vector.load %arg4[%c0_4, %c0_5] : memref<8x24xbf16, #tpu.memory_space<vmem>>, vector<8x24xbf16>
    %c0_6 = arith.constant 0 : index
    %c0_7 = arith.constant 0 : index
    %7 = vector.load %arg10[%c0_6, %c0_7] : memref<24x8xbf16, #tpu.memory_space<vmem>>, vector<24x8xbf16>
    %c0_8 = arith.constant 0 : index
    %c0_9 = arith.constant 0 : index
    %8 = vector.load %arg6[%c0_8, %c0_9] : memref<24x3xf32, #tpu.memory_space<vmem>>, vector<24x3xf32>
    %c0_10 = arith.constant 0 : index
    %c0_11 = arith.constant 0 : index
    %9 = vector.load %arg7[%c0_10, %c0_11] : memref<24x3xf32, #tpu.memory_space<vmem>>, vector<24x3xf32>
    %c0_12 = arith.constant 0 : index
    %c0_13 = arith.constant 0 : index
    %10 = vector.load %arg9[%c0_12, %c0_13] : memref<3x24xbf16, #tpu.memory_space<vmem>>, vector<3x24xbf16>
    %c0_14 = arith.constant 0 : index
    %c0_15 = arith.constant 0 : index
    %11 = vector.load %arg12[%c0_14, %c0_15] : memref<16x48xbf16, #tpu.memory_space<vmem>>, vector<16x48xbf16>
    %c0_16 = arith.constant 0 : index
    %c0_17 = arith.constant 0 : index
    %12 = vector.load %arg11[%c0_16, %c0_17] : memref<1x8xf32, #tpu.memory_space<vmem>>, vector<1x8xf32>
    %13 = vector.shape_cast %12 : vector<1x8xf32> to vector<1x8xf32>
    %14 = vector.broadcast %13 : vector<1x8xf32> to vector<8x8xf32>
    %c0_18 = arith.constant 0 : index
    %c0_19 = arith.constant 0 : index
    %15 = vector.load %arg13[%c0_18, %c0_19] : memref<1x48xf32, #tpu.memory_space<vmem>>, vector<1x48xf32>
    %16 = vector.shape_cast %15 : vector<1x48xf32> to vector<1x48xf32>
    %17 = vector.broadcast %16 : vector<1x48xf32> to vector<8x48xf32>
    %c0_20 = arith.constant 0 : index
    %c0_21 = arith.constant 0 : index
    %18 = vector.load %arg14[%c0_20, %c0_21] : memref<1x8xf32, #tpu.memory_space<vmem>>, vector<1x8xf32>
    %19 = vector.shape_cast %18 : vector<1x8xf32> to vector<1x8xf32>
    %20 = vector.broadcast %19 : vector<1x8xf32> to vector<8x8xf32>
    %c0_22 = arith.constant 0 : index
    %c0_23 = arith.constant 0 : index
    %21 = vector.load %arg15[%c0_22, %c0_23] : memref<1x8xf32, #tpu.memory_space<vmem>>, vector<1x8xf32>
    %22 = vector.shape_cast %21 : vector<1x8xf32> to vector<1x8xf32>
    %23 = vector.broadcast %22 : vector<1x8xf32> to vector<8x8xf32>
    %c0_24 = arith.constant 0 : index
    %c0_25 = arith.constant 0 : index
    %24 = vector.load %arg1[%c0_24, %c0_25] : memref<16x6xbf16, #tpu.memory_space<vmem>>, vector<16x6xbf16>
    %c0_26 = arith.constant 0 : index
    %c0_27 = arith.constant 0 : index
    %25 = vector.load %arg5[%c0_26, %c0_27] : memref<6x24xbf16, #tpu.memory_space<vmem>>, vector<6x24xbf16>
    %cst_28 = arith.constant dense<0.000000e+00> : vector<16x24xf32>
    %26 = tpu.matmul %24, %25, %cst_28 {dimension_numbers = #tpu.dot_dimension_numbers<[1], [0], [0], [1], [0, 0, 1, 1], [], []>} : vector<16x6xbf16>, vector<6x24xbf16>, vector<16x24xf32> -> vector<16x24xf32>
    %c0_29 = arith.constant 0 : index
    %c0_30 = arith.constant 0 : index
    %27 = vector.load %arg8[%c0_29, %c0_30] : memref<24x3xf32, #tpu.memory_space<vmem>>, vector<24x3xf32>
    %cst_31 = arith.constant dense<0.000000e+00> : vector<16x3xf32>
    %28 = tpu.matmul %26, %27, %cst_31 {dimension_numbers = #tpu.dot_dimension_numbers<[1], [0], [0], [1], [0, 0, 1, 1], [], []>} : vector<16x24xf32>, vector<24x3xf32>, vector<16x3xf32> -> vector<16x3xf32>
    %c0_32 = arith.constant 0 : index
    %c0_33 = arith.constant 0 : index
    %29 = vector.load %arg0[%c0_32, %c0_33] : memref<8x8xf32, #tpu.memory_space<vmem>>, vector<8x8xf32>
    %c0_i32 = arith.constant 0 : i32
    %c3_i32 = arith.constant 3 : i32
    %30 = arith.addi %c0_i32, %c3_i32 : i32
    %c1_i32 = arith.constant 1 : i32
    %31:2 = scf.for %arg17 = %c0_i32 to %30 step %c1_i32 iter_args(%arg18 = %29, %arg19 = %29) -> (vector<8x8xf32>, vector<8x8xf32>)  : i32 {
      %33 = arith.truncf %arg18 : vector<8x8xf32> to vector<8x8xbf16>
      %cst_36 = arith.constant dense<0.000000e+00> : vector<8x24xf32>
      %34 = tpu.matmul %33, %6, %cst_36 {dimension_numbers = #tpu.dot_dimension_numbers<[1], [0], [0], [1], [0, 0, 1, 1], [], []>} : vector<8x8xbf16>, vector<8x24xbf16>, vector<8x24xf32> -> vector<8x24xf32>
      %35 = arith.truncf %34 : vector<8x24xf32> to vector<8x24xbf16>
      %cst_37 = arith.constant dense<0.000000e+00> : vector<16x24xf32>
      %36 = tpu.matmul %0, %35, %cst_37 {dimension_numbers = #tpu.dot_dimension_numbers<[1], [0], [0], [1], [0, 0, 1, 1], [], []>} : vector<16x8xbf16>, vector<8x24xbf16>, vector<16x24xf32> -> vector<16x24xf32>
      %cst_38 = arith.constant dense<0.000000e+00> : vector<8x3xf32>
      %37 = tpu.matmul %34, %8, %cst_38 {dimension_numbers = #tpu.dot_dimension_numbers<[1], [0], [0], [1], [0, 0, 1, 1], [], []>} : vector<8x24xf32>, vector<24x3xf32>, vector<8x3xf32> -> vector<8x3xf32>
      %38 = arith.truncf %37 : vector<8x3xf32> to vector<8x3xbf16>
      %cst_39 = arith.constant dense<0.000000e+00> : vector<16x3xf32>
      %39 = tpu.matmul %1, %38, %cst_39 {dimension_numbers = #tpu.dot_dimension_numbers<[1], [0], [0], [1], [0, 0, 1, 1], [], []>} : vector<16x8xbf16>, vector<8x3xbf16>, vector<16x3xf32> -> vector<16x3xf32>
      %cst_40 = arith.constant dense<0.000000e+00> : vector<16x3xf32>
      %40 = tpu.matmul %36, %9, %cst_40 {dimension_numbers = #tpu.dot_dimension_numbers<[1], [0], [0], [1], [0, 0, 1, 1], [], []>} : vector<16x24xf32>, vector<24x3xf32>, vector<16x3xf32> -> vector<16x3xf32>
      %41 = arith.addf %39, %40 : vector<16x3xf32>
      %42 = arith.addf %41, %28 : vector<16x3xf32>
      %cst_41 = arith.constant 0.000000e+00 : f32
      %43 = vector.broadcast %cst_41 : f32 to vector<16x3xf32>
      %44 = arith.cmpf ogt, %42, %43 : vector<16x3xf32>
      %cst_42 = arith.constant 2.000000e-01 : f32
      %45 = vector.broadcast %cst_42 : f32 to vector<16x3xf32>
      %46 = arith.mulf %45, %42 : vector<16x3xf32>
      %47 = arith.select %44, %42, %46 : vector<16x3xi1>, vector<16x3xf32>
      %48 = vector.extract_strided_slice %47 {offsets = [0, 0], sizes = [16, 1], strides = [1, 1]} : vector<16x3xf32> to vector<16x1xf32>
      %49 = arith.extf %1 : vector<16x8xbf16> to vector<16x8xf32>
      %50 = vector.broadcast %48 : vector<16x1xf32> to vector<16x8xf32>
      %51 = arith.mulf %50, %49 : vector<16x8xf32>
      %52 = arith.extf %5 : vector<16x8xbf16> to vector<16x8xf32>
      %53 = arith.addf %51, %52 : vector<16x8xf32>
      %cst_43 = arith.constant dense<0xFF800000> : vector<8xf32>
      %54 = vector.multi_reduction <maximumf>, %53, %cst_43 [0] : vector<16x8xf32> to vector<8xf32>
      %55 = vector.shape_cast %54 : vector<8xf32> to vector<1x8xf32>
      %56 = vector.extract_strided_slice %47 {offsets = [0, 1], sizes = [16, 1], strides = [1, 1]} : vector<16x3xf32> to vector<16x1xf32>
      %57 = arith.extf %1 : vector<16x8xbf16> to vector<16x8xf32>
      %58 = vector.broadcast %56 : vector<16x1xf32> to vector<16x8xf32>
      %59 = arith.mulf %58, %57 : vector<16x8xf32>
      %60 = arith.extf %5 : vector<16x8xbf16> to vector<16x8xf32>
      %61 = arith.addf %59, %60 : vector<16x8xf32>
      %cst_44 = arith.constant dense<0xFF800000> : vector<8xf32>
      %62 = vector.multi_reduction <maximumf>, %61, %cst_44 [0] : vector<16x8xf32> to vector<8xf32>
      %63 = vector.shape_cast %62 : vector<8xf32> to vector<1x8xf32>
      %64 = vector.extract_strided_slice %47 {offsets = [0, 2], sizes = [16, 1], strides = [1, 1]} : vector<16x3xf32> to vector<16x1xf32>
      %65 = arith.extf %1 : vector<16x8xbf16> to vector<16x8xf32>
      %66 = vector.broadcast %64 : vector<16x1xf32> to vector<16x8xf32>
      %67 = arith.mulf %66, %65 : vector<16x8xf32>
      %68 = arith.extf %5 : vector<16x8xbf16> to vector<16x8xf32>
      %69 = arith.addf %67, %68 : vector<16x8xf32>
      %cst_45 = arith.constant dense<0xFF800000> : vector<8xf32>
      %70 = vector.multi_reduction <maximumf>, %69, %cst_45 [0] : vector<16x8xf32> to vector<8xf32>
      %71 = vector.shape_cast %70 : vector<8xf32> to vector<1x8xf32>
      %72 = tpu.concatenate %55, %63, %71 in 0 : vector<1x8xf32>, vector<1x8xf32>, vector<1x8xf32> -> vector<3x8xf32>
      %73 = arith.truncf %72 : vector<3x8xf32> to vector<3x8xbf16>
      %cst_46 = arith.constant dense<0.000000e+00> : vector<16x3xf32>
      %74 = tpu.matmul %1, %73, %cst_46 {dimension_numbers = #tpu.dot_dimension_numbers<[1], [1], [0], [0], [0, 0, 1, 0], [], []>} : vector<16x8xbf16>, vector<3x8xbf16>, vector<16x3xf32> -> vector<16x3xf32>
      %75 = arith.subf %47, %74 : vector<16x3xf32>
      %76 = math.exp %75 : vector<16x3xf32>
      %77 = arith.truncf %76 : vector<16x3xf32> to vector<16x3xbf16>
      %cst_47 = arith.constant dense<0.000000e+00> : vector<3x8xf32>
      %78 = tpu.matmul %77, %1, %cst_47 {dimension_numbers = #tpu.dot_dimension_numbers<[0], [0], [1], [1], [0, 1, 1, 1], [], []>} : vector<16x3xbf16>, vector<16x8xbf16>, vector<3x8xf32> -> vector<3x8xf32>
      %cst_48 = arith.constant 1.000000e-16 : f32
      %79 = vector.broadcast %cst_48 : f32 to vector<3x8xf32>
      %80 = arith.addf %78, %79 : vector<3x8xf32>
      %81 = tpu.reciprocal %80 {approx = true} : vector<3x8xf32> -> vector<3x8xf32>
      %82 = arith.truncf %81 : vector<3x8xf32> to vector<3x8xbf16>
      %cst_49 = arith.constant dense<0.000000e+00> : vector<16x3xf32>
      %83 = tpu.matmul %1, %82, %cst_49 {dimension_numbers = #tpu.dot_dimension_numbers<[1], [1], [0], [0], [0, 0, 1, 0], [], []>} : vector<16x8xbf16>, vector<3x8xbf16>, vector<16x3xf32> -> vector<16x3xf32>
      %84 = arith.mulf %76, %83 : vector<16x3xf32>
      %85 = arith.truncf %84 : vector<16x3xf32> to vector<16x3xbf16>
      %cst_50 = arith.constant dense<0.000000e+00> : vector<16x24xf32>
      %86 = tpu.matmul %85, %10, %cst_50 {dimension_numbers = #tpu.dot_dimension_numbers<[1], [0], [0], [1], [0, 0, 1, 1], [], []>} : vector<16x3xbf16>, vector<3x24xbf16>, vector<16x24xf32> -> vector<16x24xf32>
      %87 = arith.mulf %86, %26 : vector<16x24xf32>
      %88 = arith.mulf %87, %36 : vector<16x24xf32>
      %89 = arith.truncf %88 : vector<16x24xf32> to vector<16x24xbf16>
      %cst_51 = arith.constant dense<0.000000e+00> : vector<8x24xf32>
      %90 = tpu.matmul %1, %89, %cst_51 {dimension_numbers = #tpu.dot_dimension_numbers<[0], [0], [1], [1], [0, 1, 1, 1], [], []>} : vector<16x8xbf16>, vector<16x24xbf16>, vector<8x24xf32> -> vector<8x24xf32>
      %91 = arith.truncf %90 : vector<8x24xf32> to vector<8x24xbf16>
      %cst_52 = arith.constant dense<0.000000e+00> : vector<8x8xf32>
      %92 = tpu.matmul %91, %7, %cst_52 {dimension_numbers = #tpu.dot_dimension_numbers<[1], [0], [0], [1], [0, 0, 1, 1], [], []>} : vector<8x24xbf16>, vector<24x8xbf16>, vector<8x8xf32> -> vector<8x8xf32>
      %93 = arith.addf %92, %14 : vector<8x8xf32>
      %cst_53 = arith.constant 0.000000e+00 : f32
      %94 = vector.broadcast %cst_53 : f32 to vector<8x8xf32>
      %95 = arith.maximumf %93, %94 : vector<8x8xf32>
      %cst_54 = arith.constant 0.000000e+00 : f32
      %96 = vector.broadcast %cst_54 : f32 to vector<8x8xf32>
      %97 = arith.minimumf %93, %96 : vector<8x8xf32>
      %98 = math.exp %97 : vector<8x8xf32>
      %99 = arith.addf %95, %98 : vector<8x8xf32>
      %cst_55 = arith.constant 1.000000e+00 : f32
      %100 = vector.broadcast %cst_55 : f32 to vector<8x8xf32>
      %101 = arith.subf %99, %100 : vector<8x8xf32>
      %102 = tpu.concatenate %101, %arg19 in 1 : vector<8x8xf32>, vector<8x8xf32> -> vector<8x16xf32>
      %103 = arith.truncf %102 : vector<8x16xf32> to vector<8x16xbf16>
      %cst_56 = arith.constant dense<0.000000e+00> : vector<8x48xf32>
      %104 = tpu.matmul %103, %11, %cst_56 {dimension_numbers = #tpu.dot_dimension_numbers<[1], [0], [0], [1], [0, 0, 1, 1], [], []>} : vector<8x16xbf16>, vector<16x48xbf16>, vector<8x48xf32> -> vector<8x48xf32>
      %105 = arith.addf %104, %17 : vector<8x48xf32>
      %106 = vector.extract_strided_slice %105 {offsets = [0, 0], sizes = [8, 24], strides = [1, 1]} : vector<8x48xf32> to vector<8x24xf32>
      %107 = vector.extract_strided_slice %105 {offsets = [0, 24], sizes = [8, 24], strides = [1, 1]} : vector<8x48xf32> to vector<8x24xf32>
      %108 = vector.extract_strided_slice %106 {offsets = [0, 0], sizes = [8, 16], strides = [1, 1]} : vector<8x24xf32> to vector<8x16xf32>
      %109 = vector.extract_strided_slice %107 {offsets = [0, 0], sizes = [8, 16], strides = [1, 1]} : vector<8x24xf32> to vector<8x16xf32>
      %110 = arith.addf %108, %109 : vector<8x16xf32>
      %111 = arith.negf %110 : vector<8x16xf32>
      %112 = math.exp %111 : vector<8x16xf32>
      %cst_57 = arith.constant 1.000000e+00 : f32
      %113 = vector.broadcast %cst_57 : f32 to vector<8x16xf32>
      %114 = arith.addf %113, %112 : vector<8x16xf32>
      %115 = arith.divf %113, %114 : vector<8x16xf32>
      %116 = vector.extract_strided_slice %115 {offsets = [0, 0], sizes = [8, 8], strides = [1, 1]} : vector<8x16xf32> to vector<8x8xf32>
      %117 = vector.extract_strided_slice %115 {offsets = [0, 8], sizes = [8, 8], strides = [1, 1]} : vector<8x16xf32> to vector<8x8xf32>
      %118 = vector.extract_strided_slice %106 {offsets = [0, 16], sizes = [8, 8], strides = [1, 1]} : vector<8x24xf32> to vector<8x8xf32>
      %119 = vector.extract_strided_slice %107 {offsets = [0, 16], sizes = [8, 8], strides = [1, 1]} : vector<8x24xf32> to vector<8x8xf32>
      %120 = arith.mulf %116, %119 : vector<8x8xf32>
      %121 = arith.addf %118, %120 : vector<8x8xf32>
      %122 = math.tanh %121 : vector<8x8xf32>
      %cst_58 = arith.constant 1.000000e+00 : f32
      %123 = vector.broadcast %cst_58 : f32 to vector<8x8xf32>
      %124 = arith.subf %123, %117 : vector<8x8xf32>
      %125 = arith.mulf %124, %122 : vector<8x8xf32>
      %126 = arith.mulf %117, %arg19 : vector<8x8xf32>
      %127 = arith.addf %125, %126 : vector<8x8xf32>
      %cst_59 = arith.constant dense<0.000000e+00> : vector<8xf32>
      %128 = vector.multi_reduction <add>, %127, %cst_59 [1] : vector<8x8xf32> to vector<8xf32>
      %129 = vector.shape_cast %128 : vector<8xf32> to vector<8x1xf32>
      %cst_60 = arith.constant 8.000000e+00 : f32
      %130 = vector.broadcast %cst_60 : f32 to vector<8x1xf32>
      %131 = arith.divf %129, %130 : vector<8x1xf32>
      %132 = vector.broadcast %131 : vector<8x1xf32> to vector<8x8xf32>
      %133 = arith.subf %127, %132 : vector<8x8xf32>
      %134 = arith.mulf %133, %133 : vector<8x8xf32>
      %cst_61 = arith.constant dense<0.000000e+00> : vector<8xf32>
      %135 = vector.multi_reduction <add>, %134, %cst_61 [1] : vector<8x8xf32> to vector<8xf32>
      %136 = vector.shape_cast %135 : vector<8xf32> to vector<8x1xf32>
      %cst_62 = arith.constant 8.000000e+00 : f32
      %137 = vector.broadcast %cst_62 : f32 to vector<8x1xf32>
      %138 = arith.divf %136, %137 : vector<8x1xf32>
      %139 = vector.broadcast %131 : vector<8x1xf32> to vector<8x8xf32>
      %140 = arith.subf %127, %139 : vector<8x8xf32>
      %cst_63 = arith.constant 9.99999974E-6 : f32
      %141 = vector.broadcast %cst_63 : f32 to vector<8x1xf32>
      %142 = arith.addf %138, %141 : vector<8x1xf32>
      %143 = math.rsqrt %142 : vector<8x1xf32>
      %144 = vector.broadcast %143 : vector<8x1xf32> to vector<8x8xf32>
      %145 = arith.mulf %140, %144 : vector<8x8xf32>
      %146 = arith.mulf %145, %20 : vector<8x8xf32>
      %147 = arith.addf %146, %23 : vector<8x8xf32>
      scf.yield %147, %127 : vector<8x8xf32>, vector<8x8xf32>
    }
    %c0_34 = arith.constant 0 : index
    %c0_35 = arith.constant 0 : index
    %32 = vector.load %arg16[%c0_34, %c0_35] : memref<8x8xf32, #tpu.memory_space<vmem>>, vector<8x8xf32>
    tpu.vector_store %arg16[%c0_34, %c0_35], %31#0 {strides = array<i32>} : memref<8x8xf32, #tpu.memory_space<vmem>>, vector<8x8xf32>,
    return
  }
}

</mosaic_0001>

<llo_original>
// kernel: tpu_custom_call.1
$region0: #{tpu_custom_call.1}
  #allocation0 [shape = 'u32[]', space=smem, size = 0x4, offset = 0x4, fixed_abs, tag = 'smem constant byte address 0x4 - core index']
  #allocation1 [shape = 'u32[144,128]{1,0:T(1,128)}', space=vmem, size = 0x12000, scoped, tag = 'internal scratch']
  %s0 = inlined_call_operand.hbm [shape: f32[8,8], index: 0, kind: input, shape index: {}]
  %s1 = inlined_call_operand.hbm [shape: bf16[16,6], index: 1, kind: input, shape index: {}]
  %s2 = inlined_call_operand.hbm [shape: bf16[16,8], index: 2, kind: input, shape index: {}]
  %s3 = inlined_call_operand.hbm [shape: bf16[16,8], index: 3, kind: input, shape index: {}]
  %s4 = inlined_call_operand.hbm [shape: bf16[8,24], index: 4, kind: input, shape index: {}]
  %s5 = inlined_call_operand.hbm [shape: bf16[6,24], index: 5, kind: input, shape index: {}]
  %s6 = inlined_call_operand.hbm [shape: f32[24,3], index: 6, kind: input, shape index: {}]
  %s7 = inlined_call_operand.hbm [shape: f32[24,3], index: 7, kind: input, shape index: {}]
  %s8 = inlined_call_operand.hbm [shape: f32[24,3], index: 8, kind: input, shape index: {}]
  %s9 = inlined_call_operand.hbm [shape: bf16[3,24], index: 9, kind: input, shape index: {}]
  %s10 = inlined_call_operand.hbm [shape: bf16[24,8], index: 10, kind: input, shape index: {}]
  %s11 = inlined_call_operand.hbm [shape: f32[1,8], index: 11, kind: input, shape index: {}]
  %s12 = inlined_call_operand.hbm [shape: bf16[16,48], index: 12, kind: input, shape index: {}]
  %s13 = inlined_call_operand.hbm [shape: f32[1,48], index: 13, kind: input, shape index: {}]
  %s14 = inlined_call_operand.hbm [shape: f32[1,8], index: 14, kind: input, shape index: {}]
  %s15 = inlined_call_operand.hbm [shape: f32[1,8], index: 15, kind: input, shape index: {}]
  %s16 = inlined_call_operand.hbm [shape: f32[8,8], index: 16, kind: output, shape index: {}]
  %s17 = sld [smem:[#allocation0]]
  $region145: #{tpu_custom_call.1} parent=0
    _
  %s19 = ssub.s32 1, %s17
  %s20 = scalar_select 0, %s19, %s17
  $region1: #{tpu_custom_call.1} parent=0
    #allocation2 [shape = 'u8[4096]{0}', space=vmem, size = 0x1000, scoped, tag = 'input window, operand 0, single buffered']
    #allocation3 [shape = 's32[1]{0}', space=sflag, size = 0x4, scoped, tag = 'scoped memory for tpu_custom_call.1']
    #allocation4 [shape = 's32[1]{0}', space=sflag, size = 0x4, scoped, tag = 'scoped memory for tpu_custom_call.1']
    #allocation5 [shape = 'u8[4096]{0}', space=vmem, size = 0x1000, scoped, tag = 'input window, operand 1, single buffered']
    #allocation6 [shape = 's32[1]{0}', space=sflag, size = 0x4, scoped, tag = 'scoped memory for tpu_custom_call.1']
    #allocation7 [shape = 'u8[4096]{0}', space=vmem, size = 0x1000, scoped, tag = 'input window, operand 2, single buffered']
    #allocation8 [shape = 'u8[4096]{0}', space=vmem, size = 0x1000, scoped, tag = 'input window, operand 3, single buffered']
    #allocation9 [shape = 's32[1]{0}', space=sflag, size = 0x4, scoped, tag = 'scoped memory for tpu_custom_call.1']
    #allocation10 [shape = 'u8[2048]{0}', space=vmem, size = 0x800, scoped, tag = 'input window, operand 4, single buffered']
    #allocation11 [shape = 'u8[2048]{0}', space=vmem, size = 0x800, scoped, tag = 'input window, operand 5, single buffered']
    #allocation12 [shape = 's32[1]{0}', space=sflag, size = 0x4, scoped, tag = 'scoped memory for tpu_custom_call.1']
    #allocation13 [shape = 'u8[12288]{0}', space=vmem, size = 0x3000, scoped, tag = 'input window, operand 6, single buffered']
    #allocation14 [shape = 'u8[12288]{0}', space=vmem, size = 0x3000, scoped, tag = 'input window, operand 7, single buffered']
    #allocation15 [shape = 's32[1]{0}', space=sflag, size = 0x4, scoped, tag = 'scoped memory for tpu_custom_call.1']
    #allocation16 [shape = 'u8[12288]{0}', space=vmem, size = 0x3000, scoped, tag = 'input window, operand 8, single buffered']
    #allocation17 [shape = 'u8[1024]{0}', space=vmem, size = 0x400, scoped, tag = 'input window, operand 9, single buffered']
    #allocation18 [shape = 's32[1]{0}', space=sflag, size = 0x4, scoped, tag = 'scoped memory for tpu_custom_call.1']
    #allocation19 [shape = 'u8[6144]{0}', space=vmem, size = 0x1800, scoped, tag = 'input window, operand 10, single buffered']
    #allocation20 [shape = 'u8[512]{0}', space=vmem, size = 0x400, scoped, tag = 'input window, operand 11, single buffered']
    #allocation21 [shape = 's32[1]{0}', space=sflag, size = 0x4, scoped, tag = 'scoped memory for tpu_custom_call.1']
    #allocation22 [shape = 'u8[4096]{0}', space=vmem, size = 0x1000, scoped, tag = 'input window, operand 12, single buffered']
    #allocation23 [shape = 'u8[512]{0}', space=vmem, size = 0x400, scoped, tag = 'input window, operand 13, single buffered']
    #allocation24 [shape = 's32[1]{0}', space=sflag, size = 0x4, scoped, tag = 'scoped memory for tpu_custom_call.1']
    #allocation25 [shape = 'u8[512]{0}', space=vmem, size = 0x400, scoped, tag = 'input window, operand 14, single buffered']
    #allocation26 [shape = 'u8[512]{0}', space=vmem, size = 0x400, scoped, tag = 'input window, operand 15, single buffered']
    #allocation27 [shape = 's32[1]{0}', space=sflag, size = 0x4, scoped, tag = 'scoped memory for tpu_custom_call.1']
    #allocation28 [shape = 'u8[4096]{0}', space=vmem, size = 0x1000, scoped, tag = 'output window, operand 0, single buffered']
    %21 = vsyncpa [#allocation3], 0
    %22 = vsyncpa [#allocation6], 0
    %23 = vsyncpa [#allocation9], 0
    %24 = vsyncpa [#allocation12], 0
    %25 = vsyncpa [#allocation15], 0
    %26 = vsyncpa [#allocation18], 0
    %27 = vsyncpa [#allocation21], 0
    %28 = vsyncpa [#allocation24], 0
    %29 = vsyncpa [#allocation27], 0
    %30 = vsyncpa [#allocation4], 0
    // Predicated region
    $region2: #{tpu_custom_call.1} parent=1 // pred_check
      _
    $region3: #{tpu_custom_call.1} parent=1 // pred_check_branch
      %32 = sbr.rel (0) target = $region5
    $region4: #{tpu_custom_call.1} parent=1 // pred_region
      %s34 = ssub.s32 128, 128
      %35 = vsyncadd [#allocation3], %s34
      %s37 = sshll.u32 [#allocation2], 4
      %s38 = int_to_ptr.vmem [resolvable:$true] %s37
      %40 = dma.hbm_to_vmem [thread:$0]  %s0, 128, %s38, [#allocation3]
    $region5: #{tpu_custom_call.1} parent=1 // pred_fallthru
      _
    // Predicated region
    $region6: #{tpu_custom_call.1} parent=1 // pred_check
      _
    $region7: #{tpu_custom_call.1} parent=1 // pred_check_branch
      %42 = sbr.rel (0) target = $region9
    $region8: #{tpu_custom_call.1} parent=1 // pred_region
      %s44 = ssub.s32 128, 128
      %45 = vsyncadd [#allocation6], %s44
      %s46 = sshll.u32 [#allocation5], 4
      %s47 = int_to_ptr.vmem [resolvable:$true] %s46
      %52 = dma.hbm_to_vmem [thread:$0]  %s1, 128, %s47, [#allocation6], 64, 64, 4
    $region9: #{tpu_custom_call.1} parent=1 // pred_fallthru
      _
    // Predicated region
    $region10: #{tpu_custom_call.1} parent=1 // pred_check
      _
    $region11: #{tpu_custom_call.1} parent=1 // pred_check_branch
      %54 = sbr.rel (0) target = $region13
    $region12: #{tpu_custom_call.1} parent=1 // pred_region
      %s56 = ssub.s32 128, 128
      %57 = vsyncadd [#allocation6], %s56
      %s58 = sshll.u32 [#allocation7], 4
      %s59 = int_to_ptr.vmem [resolvable:$true] %s58
      %64 = dma.hbm_to_vmem [thread:$0]  %s2, 128, %s59, [#allocation6], 64, 64, 4
    $region13: #{tpu_custom_call.1} parent=1 // pred_fallthru
      _
    // Predicated region
    $region14: #{tpu_custom_call.1} parent=1 // pred_check
      _
    $region15: #{tpu_custom_call.1} parent=1 // pred_check_branch
      %66 = sbr.rel (0) target = $region17
    $region16: #{tpu_custom_call.1} parent=1 // pred_region
      %s68 = ssub.s32 128, 128
      %69 = vsyncadd [#allocation9], %s68
      %s70 = sshll.u32 [#allocation8], 4
      %s71 = int_to_ptr.vmem [resolvable:$true] %s70
      %76 = dma.hbm_to_vmem [thread:$0]  %s3, 128, %s71, [#allocation9], 64, 64, 4
    $region17: #{tpu_custom_call.1} parent=1 // pred_fallthru
      _
    // Predicated region
    $region18: #{tpu_custom_call.1} parent=1 // pred_check
      _
    $region19: #{tpu_custom_call.1} parent=1 // pred_check_branch
      %78 = sbr.rel (0) target = $region21
    $region20: #{tpu_custom_call.1} parent=1 // pred_region
      %s80 = ssub.s32 64, 64
      %81 = vsyncadd [#allocation9], %s80
      %s83 = sshll.u32 [#allocation10], 4
      %s84 = int_to_ptr.vmem [resolvable:$true] %s83
      %86 = dma.hbm_to_vmem [thread:$0]  %s4, 64, %s84, [#allocation9]
    $region21: #{tpu_custom_call.1} parent=1 // pred_fallthru
      _
    // Predicated region
    $region22: #{tpu_custom_call.1} parent=1 // pred_check
      _
    $region23: #{tpu_custom_call.1} parent=1 // pred_check_branch
      %88 = sbr.rel (0) target = $region25
    $region24: #{tpu_custom_call.1} parent=1 // pred_region
      %s90 = ssub.s32 64, 64
      %91 = vsyncadd [#allocation12], %s90
      %s93 = sshll.u32 [#allocation11], 4
      %s94 = int_to_ptr.vmem [resolvable:$true] %s93
      %96 = dma.hbm_to_vmem [thread:$0]  %s5, 64, %s94, [#allocation12]
    $region25: #{tpu_custom_call.1} parent=1 // pred_fallthru
      _
    // Predicated region
    $region26: #{tpu_custom_call.1} parent=1 // pred_check
      _
    $region27: #{tpu_custom_call.1} parent=1 // pred_check_branch
      %98 = sbr.rel (0) target = $region29
    $region28: #{tpu_custom_call.1} parent=1 // pred_region
      %s100 = ssub.s32 384, 384
      %101 = vsyncadd [#allocation12], %s100
      %s102 = sshll.u32 [#allocation13], 4
      %s103 = int_to_ptr.vmem [resolvable:$true] %s102
      %108 = dma.hbm_to_vmem [thread:$0]  %s6, 384, %s103, [#allocation12], 128, 128, 8
    $region29: #{tpu_custom_call.1} parent=1 // pred_fallthru
      _
    // Predicated region
    $region30: #{tpu_custom_call.1} parent=1 // pred_check
      _
    $region31: #{tpu_custom_call.1} parent=1 // pred_check_branch
      %110 = sbr.rel (0) target = $region33
    $region32: #{tpu_custom_call.1} parent=1 // pred_region
      %s112 = ssub.s32 384, 384
      %113 = vsyncadd [#allocation15], %s112
      %s114 = sshll.u32 [#allocation14], 4
      %s115 = int_to_ptr.vmem [resolvable:$true] %s114
      %120 = dma.hbm_to_vmem [thread:$0]  %s7, 384, %s115, [#allocation15], 128, 128, 8
    $region33: #{tpu_custom_call.1} parent=1 // pred_fallthru
      _
    // Predicated region
    $region34: #{tpu_custom_call.1} parent=1 // pred_check
      _
    $region35: #{tpu_custom_call.1} parent=1 // pred_check_branch
      %122 = sbr.rel (0) target = $region37
    $region36: #{tpu_custom_call.1} parent=1 // pred_region
      %s124 = ssub.s32 384, 384
      %125 = vsyncadd [#allocation15], %s124
      %s126 = sshll.u32 [#allocation16], 4
      %s127 = int_to_ptr.vmem [resolvable:$true] %s126
      %132 = dma.hbm_to_vmem [thread:$0]  %s8, 384, %s127, [#allocation15], 128, 128, 8
    $region37: #{tpu_custom_call.1} parent=1 // pred_fallthru
      _
    // Predicated region
    $region38: #{tpu_custom_call.1} parent=1 // pred_check
      _
    $region39: #{tpu_custom_call.1} parent=1 // pred_check_branch
      %134 = sbr.rel (0) target = $region41
    $region40: #{tpu_custom_call.1} parent=1 // pred_region
      %s136 = ssub.s32 32, 32
      %137 = vsyncadd [#allocation18], %s136
      %s139 = sshll.u32 [#allocation17], 4
      %s140 = int_to_ptr.vmem [resolvable:$true] %s139
      %142 = dma.hbm_to_vmem [thread:$0]  %s9, 32, %s140, [#allocation18]
    $region41: #{tpu_custom_call.1} parent=1 // pred_fallthru
      _
    // Predicated region
    $region42: #{tpu_custom_call.1} parent=1 // pred_check
      _
    $region43: #{tpu_custom_call.1} parent=1 // pred_check_branch
      %144 = sbr.rel (0) target = $region45
    $region44: #{tpu_custom_call.1} parent=1 // pred_region
      %s146 = ssub.s32 192, 192
      %147 = vsyncadd [#allocation18], %s146
      %s148 = sshll.u32 [#allocation19], 4
      %s149 = int_to_ptr.vmem [resolvable:$true] %s148
      %154 = dma.hbm_to_vmem [thread:$0]  %s10, 192, %s149, [#allocation18], 64, 64, 4
    $region45: #{tpu_custom_call.1} parent=1 // pred_fallthru
      _
    // Predicated region
    $region46: #{tpu_custom_call.1} parent=1 // pred_check
      _
    $region47: #{tpu_custom_call.1} parent=1 // pred_check_branch
      %156 = sbr.rel (0) target = $region49
    $region48: #{tpu_custom_call.1} parent=1 // pred_region
      %s158 = ssub.s32 16, 16
      %159 = vsyncadd [#allocation21], %s158
      %s161 = sshll.u32 [#allocation20], 4
      %s162 = int_to_ptr.vmem [resolvable:$true] %s161
      %164 = dma.hbm_to_vmem [thread:$0]  %s11, 16, %s162, [#allocation21]
    $region49: #{tpu_custom_call.1} parent=1 // pred_fallthru
      _
    // Predicated region
    $region50: #{tpu_custom_call.1} parent=1 // pred_check
      _
    $region51: #{tpu_custom_call.1} parent=1 // pred_check_branch
      %166 = sbr.rel (0) target = $region53
    $region52: #{tpu_custom_call.1} parent=1 // pred_region
      %s168 = ssub.s32 128, 128
      %169 = vsyncadd [#allocation21], %s168
      %s170 = sshll.u32 [#allocation22], 4
      %s171 = int_to_ptr.vmem [resolvable:$true] %s170
      %176 = dma.hbm_to_vmem [thread:$0]  %s12, 128, %s171, [#allocation21], 64, 64, 4
    $region53: #{tpu_custom_call.1} parent=1 // pred_fallthru
      _
    // Predicated region
    $region54: #{tpu_custom_call.1} parent=1 // pred_check
      _
    $region55: #{tpu_custom_call.1} parent=1 // pred_check_branch
      %178 = sbr.rel (0) target = $region57
    $region56: #{tpu_custom_call.1} parent=1 // pred_region
      %s180 = ssub.s32 16, 16
      %181 = vsyncadd [#allocation24], %s180
      %s183 = sshll.u32 [#allocation23], 4
      %s184 = int_to_ptr.vmem [resolvable:$true] %s183
      %186 = dma.hbm_to_vmem [thread:$0]  %s13, 16, %s184, [#allocation24]
    $region57: #{tpu_custom_call.1} parent=1 // pred_fallthru
      _
    // Predicated region
    $region58: #{tpu_custom_call.1} parent=1 // pred_check
      _
    $region59: #{tpu_custom_call.1} parent=1 // pred_check_branch
      %188 = sbr.rel (0) target = $region61
    $region60: #{tpu_custom_call.1} parent=1 // pred_region
      %s190 = ssub.s32 16, 16
      %191 = vsyncadd [#allocation24], %s190
      %s193 = sshll.u32 [#allocation25], 4
      %s194 = int_to_ptr.vmem [resolvable:$true] %s193
      %196 = dma.hbm_to_vmem [thread:$0]  %s14, 16, %s194, [#allocation24]
    $region61: #{tpu_custom_call.1} parent=1 // pred_fallthru
      _
    // Predicated region
    $region62: #{tpu_custom_call.1} parent=1 // pred_check
      _
    $region63: #{tpu_custom_call.1} parent=1 // pred_check_branch
      %198 = sbr.rel (0) target = $region65
    $region64: #{tpu_custom_call.1} parent=1 // pred_region
      %s200 = ssub.s32 16, 16
      %201 = vsyncadd [#allocation27], %s200
      %s203 = sshll.u32 [#allocation26], 4
      %s204 = int_to_ptr.vmem [resolvable:$true] %s203
      %206 = dma.hbm_to_vmem [thread:$0]  %s15, 16, %s204, [#allocation27]
    $region65: #{tpu_custom_call.1} parent=1 // pred_fallthru
      _
    // Predicated region
    $region66: #{tpu_custom_call.1} parent=1 // pred_check
      _
    $region67: #{tpu_custom_call.1} parent=1 // pred_check_branch
      %208 = sbr.rel (0) target = $region69
    $region68: #{tpu_custom_call.1} parent=1 // pred_region
      %209 = dma.done [#allocation3], 128
    $region69: #{tpu_custom_call.1} parent=1 // pred_fallthru
      _
    // Predicated region
    $region70: #{tpu_custom_call.1} parent=1 // pred_check
      _
    $region71: #{tpu_custom_call.1} parent=1 // pred_check_branch
      %211 = sbr.rel (0) target = $region73
    $region72: #{tpu_custom_call.1} parent=1 // pred_region
      %212 = dma.done [#allocation6], 128
    $region73: #{tpu_custom_call.1} parent=1 // pred_fallthru
      _
    // Predicated region
    $region74: #{tpu_custom_call.1} parent=1 // pred_check
      _
    $region75: #{tpu_custom_call.1} parent=1 // pred_check_branch
      %214 = sbr.rel (0) target = $region77
    $region76: #{tpu_custom_call.1} parent=1 // pred_region
      %215 = dma.done [#allocation6], 128
    $region77: #{tpu_custom_call.1} parent=1 // pred_fallthru
      _
    // Predicated region
    $region78: #{tpu_custom_call.1} parent=1 // pred_check
      _
    $region79: #{tpu_custom_call.1} parent=1 // pred_check_branch
      %217 = sbr.rel (0) target = $region81
    $region80: #{tpu_custom_call.1} parent=1 // pred_region
      %218 = dma.done [#allocation9], 128
    $region81: #{tpu_custom_call.1} parent=1 // pred_fallthru
      _
    // Predicated region
    $region82: #{tpu_custom_call.1} parent=1 // pred_check
      _
    $region83: #{tpu_custom_call.1} parent=1 // pred_check_branch
      %220 = sbr.rel (0) target = $region85
    $region84: #{tpu_custom_call.1} parent=1 // pred_region
      %221 = dma.done [#allocation9], 64
    $region85: #{tpu_custom_call.1} parent=1 // pred_fallthru
      _
    // Predicated region
    $region86: #{tpu_custom_call.1} parent=1 // pred_check
      _
    $region87: #{tpu_custom_call.1} parent=1 // pred_check_branch
      %223 = sbr.rel (0) target = $region89
    $region88: #{tpu_custom_call.1} parent=1 // pred_region
      %224 = dma.done [#allocation12], 64
    $region89: #{tpu_custom_call.1} parent=1 // pred_fallthru
      _
    // Predicated region
    $region90: #{tpu_custom_call.1} parent=1 // pred_check
      _
    $region91: #{tpu_custom_call.1} parent=1 // pred_check_branch
      %226 = sbr.rel (0) target = $region93
    $region92: #{tpu_custom_call.1} parent=1 // pred_region
      %227 = dma.done [#allocation12], 384
    $region93: #{tpu_custom_call.1} parent=1 // pred_fallthru
      _
    // Predicated region
    $region94: #{tpu_custom_call.1} parent=1 // pred_check
      _
    $region95: #{tpu_custom_call.1} parent=1 // pred_check_branch
      %229 = sbr.rel (0) target = $region97
    $region96: #{tpu_custom_call.1} parent=1 // pred_region
      %230 = dma.done [#allocation15], 384
    $region97: #{tpu_custom_call.1} parent=1 // pred_fallthru
      _
    // Predicated region
    $region98: #{tpu_custom_call.1} parent=1 // pred_check
      _
    $region99: #{tpu_custom_call.1} parent=1 // pred_check_branch
      %232 = sbr.rel (0) target = $region101
    $region100: #{tpu_custom_call.1} parent=1 // pred_region
      %233 = dma.done [#allocation15], 384
    $region101: #{tpu_custom_call.1} parent=1 // pred_fallthru
      _
    // Predicated region
    $region102: #{tpu_custom_call.1} parent=1 // pred_check
      _
    $region103: #{tpu_custom_call.1} parent=1 // pred_check_branch
      %235 = sbr.rel (0) target = $region105
    $region104: #{tpu_custom_call.1} parent=1 // pred_region
      %236 = dma.done [#allocation18], 32
    $region105: #{tpu_custom_call.1} parent=1 // pred_fallthru
      _
    // Predicated region
    $region106: #{tpu_custom_call.1} parent=1 // pred_check
      _
    $region107: #{tpu_custom_call.1} parent=1 // pred_check_branch
      %238 = sbr.rel (0) target = $region109
    $region108: #{tpu_custom_call.1} parent=1 // pred_region
      %239 = dma.done [#allocation18], 192
    $region109: #{tpu_custom_call.1} parent=1 // pred_fallthru
      _
    // Predicated region
    $region110: #{tpu_custom_call.1} parent=1 // pred_check
      _
    $region111: #{tpu_custom_call.1} parent=1 // pred_check_branch
      %241 = sbr.rel (0) target = $region113
    $region112: #{tpu_custom_call.1} parent=1 // pred_region
      %242 = dma.done [#allocation21], 16
    $region113: #{tpu_custom_call.1} parent=1 // pred_fallthru
      _
    // Predicated region
    $region114: #{tpu_custom_call.1} parent=1 // pred_check
      _
    $region115: #{tpu_custom_call.1} parent=1 // pred_check_branch
      %244 = sbr.rel (0) target = $region117
    $region116: #{tpu_custom_call.1} parent=1 // pred_region
      %245 = dma.done [#allocation21], 128
    $region117: #{tpu_custom_call.1} parent=1 // pred_fallthru
      _
    // Predicated region
    $region118: #{tpu_custom_call.1} parent=1 // pred_check
      _
    $region119: #{tpu_custom_call.1} parent=1 // pred_check_branch
      %247 = sbr.rel (0) target = $region121
    $region120: #{tpu_custom_call.1} parent=1 // pred_region
      %248 = dma.done [#allocation24], 16
    $region121: #{tpu_custom_call.1} parent=1 // pred_fallthru
      _
    // Predicated region
    $region122: #{tpu_custom_call.1} parent=1 // pred_check
      _
    $region123: #{tpu_custom_call.1} parent=1 // pred_check_branch
      %250 = sbr.rel (0) target = $region125
    $region124: #{tpu_custom_call.1} parent=1 // pred_region
      %251 = dma.done [#allocation24], 16
    $region125: #{tpu_custom_call.1} parent=1 // pred_fallthru
      _
    // Predicated region
    $region126: #{tpu_custom_call.1} parent=1 // pred_check
      _
    $region127: #{tpu_custom_call.1} parent=1 // pred_check_branch
      %253 = sbr.rel (0) target = $region129
    $region128: #{tpu_custom_call.1} parent=1 // pred_region
      %254 = dma.done [#allocation27], 16
    $region129: #{tpu_custom_call.1} parent=1 // pred_fallthru
      _
    %v258 = vld [vmem:[#allocation7] sm:$0xf]
    %v259 = vld [vmem:[#allocation7 + $0x4] sm:$0xf]
    %v260 = vld [vmem:[#allocation8] sm:$0xf]
    %v261 = vld [vmem:[#allocation8 + $0x4] sm:$0xf]
    %v262 = vsub.bf16 %v260, 1065369472
    %v263 = vsub.bf16 %v261, 1065369472
    %v264 = vmul.bf16 %v262, 1900704074
    %v265 = vmul.bf16 %v263, 1900704074
    %v266 = vld [vmem:[#allocation10] sm:$0xf]
    %v267 = vld [vmem:[#allocation19] sm:$0xf]
    %v268 = vld [vmem:[#allocation19 + $0x4] sm:$0xf]
    %v269 = vld [vmem:[#allocation19 + $0x8] sm:$0xf]
    %v270 = vld [vmem:[#allocation13] sm:$0xff]
    %v271 = vld [vmem:[#allocation13 + $0x8] sm:$0xff]
    %v272 = vld [vmem:[#allocation13 + $0x10] sm:$0xff]
    %v273 = vld [vmem:[#allocation14] sm:$0xff]
    %v274 = vld [vmem:[#allocation14 + $0x8] sm:$0xff]
    %v275 = vld [vmem:[#allocation14 + $0x10] sm:$0xff]
    %v276 = vld [vmem:[#allocation17] sm:$0x3]
    %v277 = vld [vmem:[#allocation22] sm:$0xf]
    %v278 = vld [vmem:[#allocation22 + $0x4] sm:$0xf]
    %v279 = vld [vmem:[#allocation20] sm:$0x1]
    %v281 = vlaneseq
    %v282 = vshrl.u32 %v281, 7
    %v283 = vsub.s32 0, %v282
    %v284 = vrot.slane %v279, %v283
    %v286 = vld [vmem:[#allocation23] sm:$0x1]
    %v288 = vlaneseq
    %v289 = vshrl.u32 %v288, 7
    %v290 = vsub.s32 0, %v289
    %v291 = vrot.slane %v286, %v290
    %v293 = vld [vmem:[#allocation25] sm:$0x1]
    %v295 = vlaneseq
    %v296 = vshrl.u32 %v295, 7
    %v297 = vsub.s32 0, %v296
    %v298 = vrot.slane %v293, %v297
    %v299 = vld [vmem:[#allocation26] sm:$0x1]
    %v301 = vlaneseq
    %v302 = vshrl.u32 %v301, 7
    %v303 = vsub.s32 0, %v302
    %v304 = vrot.slane %v299, %v303
    %v305 = vld [vmem:[#allocation5] sm:$0xf]
    %v306 = vld [vmem:[#allocation5 + $0x4] sm:$0xf]
    %v307 = vld [vmem:[#allocation11] sm:$0x7]
    %v310 = vunpack.c.l.b16 %v305
    %v311 = vunpack.c.l.b16 %v306
    %v312 = vpack.c.b16 %v311, %v310
    %vm313 = vcmask 48128
    %v315 = vsel %vm313, %v312, 0
    %vm317 = vcmask 1042432
    %v319 = vsel %vm317, %v307, 0
    %321 = vmatprep.subr.bf16.mxu0 0
    %322 = vmatpush1.bf16.msra.mxu0 %v319
    %323 = vmatprep.subr.bf16.mxu0 0
    %324 = vmatpush1.bf16.msra.mxu0 0
    %325 = vmatprep.subr.bf16.mxu0 0
    %326 = vmatpush1.bf16.msra.mxu0 0
    %327 = vmatprep.subr.bf16.mxu0 0
    %328 = vmatpush1.bf16.msra.mxu0 0
    %329 = vmatprep.subr.bf16.mxu0 0
    %330 = vmatpush1.bf16.msra.mxu0 0
    %331 = vmatprep.subr.bf16.mxu0 0
    %332 = vmatpush1.bf16.msra.mxu0 0
    %333 = vmatprep.subr.bf16.mxu0 0
    %334 = vmatpush1.bf16.msra.mxu0 0
    %335 = vmatprep.subr.bf16.mxu0 0
    %336 = vmatpush1.bf16.msra.mxu0 0
    %337 = vmatprep.subr.bf16.mxu0 0
    %338 = vmatpush1.bf16.msra.mxu0 0
    %339 = vmatprep.subr.bf16.mxu0 0
    %340 = vmatpush1.bf16.msra.mxu0 0
    %341 = vmatprep.subr.bf16.mxu0 0
    %342 = vmatpush1.bf16.msra.mxu0 0
    %343 = vmatprep.subr.bf16.mxu0 0
    %344 = vmatpush1.bf16.msra.mxu0 0
    %345 = vmatprep.subr.bf16.mxu0 0
    %346 = vmatpush1.bf16.msra.mxu0 0
    %347 = vmatprep.subr.bf16.mxu0 0
    %348 = vmatpush1.bf16.msra.mxu0 0
    %349 = vmatprep.subr.bf16.mxu0 0
    %350 = vmatpush1.bf16.msra.mxu0 0
    %351 = vmatprep.subr.bf16.mxu0 0
    %352 = vmatpush1.bf16.msra.mxu0 0
    %353 = vmatprep.mubr.bf16.mxu0 0
    %354 = vmatmul.mubr.bf16.gmra.mrb[0].mxu0 %v315
    %v355 = vpop.f32.mrb[0].mxu0
    %v356 = vadd.f32 0.0, %v355
    %v357 = vpop.f32.mrb[0].mxu0
    %v358 = vpop.f32.mrb[0].mxu0
    %v359 = vadd.f32 0.0, %v358
    %v360 = vpop.f32.mrb[0].mxu0
    %361 = vdwg.mxu0
    %v362 = vld [vmem:[#allocation16] sm:$0xff]
    %v363 = vld [vmem:[#allocation16 + $0x8] sm:$0xff]
    %v364 = vld [vmem:[#allocation16 + $0x10] sm:$0xff]
    %vm365 = vcmask 195584
    %v367 = vsel %vm365, %v356, 0
    %v370 = vsel %vm365, %v359, 0
    %372 = vmatprep.subr.mxu0 0.0
    %373 = vmatpush1.msra.mxu0 %v362
    %374 = vmatprep.subr.mxu0 0.0
    %375 = vmatpush1.msra.mxu0 %v363
    %376 = vmatprep.subr.mxu0 0.0
    %377 = vmatpush1.msra.mxu0 %v364
    %378 = vmatprep.subr.mxu0 0.0
    %379 = vmatpush1.msra.mxu0 0.0
    %380 = vmatprep.subr.mxu0 0.0
    %381 = vmatpush1.msra.mxu0 0.0
    %382 = vmatprep.subr.mxu0 0.0
    %383 = vmatpush1.msra.mxu0 0.0
    %384 = vmatprep.subr.mxu0 0.0
    %385 = vmatpush1.msra.mxu0 0.0
    %386 = vmatprep.subr.mxu0 0.0
    %387 = vmatpush1.msra.mxu0 0.0
    %388 = vmatprep.subr.mxu0 0.0
    %389 = vmatpush1.msra.mxu0 0.0
    %390 = vmatprep.subr.mxu0 0.0
    %391 = vmatpush1.msra.mxu0 0.0
    %392 = vmatprep.subr.mxu0 0.0
    %393 = vmatpush1.msra.mxu0 0.0
    %394 = vmatprep.subr.mxu0 0.0
    %395 = vmatpush1.msra.mxu0 0.0
    %396 = vmatprep.subr.mxu0 0.0
    %397 = vmatpush1.msra.mxu0 0.0
    %398 = vmatprep.subr.mxu0 0.0
    %399 = vmatpush1.msra.mxu0 0.0
    %400 = vmatprep.subr.mxu0 0.0
    %401 = vmatpush1.msra.mxu0 0.0
    %402 = vmatprep.subr.mxu0 0.0
    %403 = vmatpush1.msra.mxu0 0.0
    %404 = vmatprep.subr.mxu0 0.0
    %405 = vmatpush1.msra.mxu0 0.0
    %406 = vmatprep.subr.mxu0 0.0
    %407 = vmatpush1.msra.mxu0 0.0
    %408 = vmatprep.subr.mxu0 0.0
    %409 = vmatpush1.msra.mxu0 0.0
    %410 = vmatprep.subr.mxu0 0.0
    %411 = vmatpush1.msra.mxu0 0.0
    %412 = vmatprep.subr.mxu0 0.0
    %413 = vmatpush1.msra.mxu0 0.0
    %414 = vmatprep.subr.mxu0 0.0
    %415 = vmatpush1.msra.mxu0 0.0
    %416 = vmatprep.subr.mxu0 0.0
    %417 = vmatpush1.msra.mxu0 0.0
    %418 = vmatprep.subr.mxu0 0.0
    %419 = vmatpush1.msra.mxu0 0.0
    %420 = vmatprep.subr.mxu0 0.0
    %421 = vmatpush1.msra.mxu0 0.0
    %422 = vmatprep.subr.mxu0 0.0
    %423 = vmatpush1.msra.mxu0 0.0
    %424 = vmatprep.subr.mxu0 0.0
    %425 = vmatpush1.msra.mxu0 0.0
    %426 = vmatprep.subr.mxu0 0.0
    %427 = vmatpush1.msra.mxu0 0.0
    %428 = vmatprep.subr.mxu0 0.0
    %429 = vmatpush1.msra.mxu0 0.0
    %430 = vmatprep.subr.mxu0 0.0
    %431 = vmatpush1.msra.mxu0 0.0
    %432 = vmatprep.subr.mxu0 0.0
    %433 = vmatpush1.msra.mxu0 0.0
    %434 = vmatprep.subr.mxu0 0.0
    %435 = vmatpush1.msra.mxu0 0.0
    %436 = vmatprep.mubr.f32.mxu0 0.0
    %437 = vmatmul.mubr.f32.gmra.mrb[0].mxu0 %v367
    %v438 = vpop.f32.mrb[0].mxu0
    %v439 = vadd.f32 0.0, %v438
    %v440 = vpop.f32.mrb[0].mxu0
    %441 = vmatprep.mubr.f32.mxu0 0.0
    %442 = vmatmul.mubr.f32.gmra.mrb[0].mxu0 %v370
    %v443 = vpop.f32.mrb[0].mxu0
    %v444 = vadd.f32 0.0, %v443
    %v445 = vpop.f32.mrb[0].mxu0
    %446 = vdwg.mxu0
    %v447 = vld [vmem:[#allocation2] sm:$0xff]
    loop: start=0, step=1, limit=3
    $region130: #{tpu_custom_call.1} parent=1 // loop_pre_header
      _
    $region131: #{tpu_custom_call.1} parent=1 // loop_header
      %s449 = sphi 0, %s453
      %p450 = scmp.ge.s32.totalorder %s449, 3
      %v454 = vphi %v447, %v1300
      %v455 = vphi %v447, %v1270
    $region132: #{tpu_custom_call.1} parent=1 // loop_header_branch
      %452 = sbr.rel (%p450) target = $region136
    $region133: #{tpu_custom_call.1} parent=1 // loop_body
      %v456 = vpack.c.bf16 %v454, %v454
      %vm457 = vcmask 64512
      %v459 = vsel %vm457, %v456, 0
      %vm461 = vcmask 1043456
      %v463 = vsel %vm461, %v266, 0
      %465 = vmatprep.subr.bf16.mxu0 0
      %466 = vmatpush1.bf16.msra.mxu0 %v463
      %467 = vmatprep.subr.bf16.mxu0 0
      %468 = vmatpush1.bf16.msra.mxu0 0
      %469 = vmatprep.subr.bf16.mxu0 0
      %470 = vmatpush1.bf16.msra.mxu0 0
      %471 = vmatprep.subr.bf16.mxu0 0
      %472 = vmatpush1.bf16.msra.mxu0 0
      %473 = vmatprep.subr.bf16.mxu0 0
      %474 = vmatpush1.bf16.msra.mxu0 0
      %475 = vmatprep.subr.bf16.mxu0 0
      %476 = vmatpush1.bf16.msra.mxu0 0
      %477 = vmatprep.subr.bf16.mxu0 0
      %478 = vmatpush1.bf16.msra.mxu0 0
      %479 = vmatprep.subr.bf16.mxu0 0
      %480 = vmatpush1.bf16.msra.mxu0 0
      %481 = vmatprep.subr.bf16.mxu0 0
      %482 = vmatpush1.bf16.msra.mxu0 0
      %483 = vmatprep.subr.bf16.mxu0 0
      %484 = vmatpush1.bf16.msra.mxu0 0
      %485 = vmatprep.subr.bf16.mxu0 0
      %486 = vmatpush1.bf16.msra.mxu0 0
      %487 = vmatprep.subr.bf16.mxu0 0
      %488 = vmatpush1.bf16.msra.mxu0 0
      %489 = vmatprep.subr.bf16.mxu0 0
      %490 = vmatpush1.bf16.msra.mxu0 0
      %491 = vmatprep.subr.bf16.mxu0 0
      %492 = vmatpush1.bf16.msra.mxu0 0
      %493 = vmatprep.subr.bf16.mxu0 0
      %494 = vmatpush1.bf16.msra.mxu0 0
      %495 = vmatprep.subr.bf16.mxu0 0
      %496 = vmatpush1.bf16.msra.mxu0 0
      %497 = vmatprep.mubr.bf16.mxu0 0
      %498 = vmatmul.mubr.bf16.gmra.mrb[0].mxu0 %v459
      %v499 = vpop.f32.mrb[0].mxu0
      %v500 = vadd.f32 0.0, %v499
      %v501 = vpop.f32.mrb[0].mxu0
      %v502 = vpop.f32.mrb[0].mxu0
      %v503 = vpop.f32.mrb[0].mxu0
      %504 = vdwg.mxu0
      %v505 = vpack.c.bf16 %v500, %v500
      %v508 = vunpack.c.l.b16 %v258
      %v509 = vunpack.c.l.b16 %v259
      %v510 = vpack.c.b16 %v509, %v508
      %v512 = vsel %vm457, %v510, 0
      %v515 = vsel %vm461, %v505, 0
      %517 = vmatprep.subr.bf16.mxu0 0
      %518 = vmatpush1.bf16.msra.mxu0 %v515
      %519 = vmatprep.subr.bf16.mxu0 0
      %520 = vmatpush1.bf16.msra.mxu0 0
      %521 = vmatprep.subr.bf16.mxu0 0
      %522 = vmatpush1.bf16.msra.mxu0 0
      %523 = vmatprep.subr.bf16.mxu0 0
      %524 = vmatpush1.bf16.msra.mxu0 0
      %525 = vmatprep.subr.bf16.mxu0 0
      %526 = vmatpush1.bf16.msra.mxu0 0
      %527 = vmatprep.subr.bf16.mxu0 0
      %528 = vmatpush1.bf16.msra.mxu0 0
      %529 = vmatprep.subr.bf16.mxu0 0
      %530 = vmatpush1.bf16.msra.mxu0 0
      %531 = vmatprep.subr.bf16.mxu0 0
      %532 = vmatpush1.bf16.msra.mxu0 0
      %533 = vmatprep.subr.bf16.mxu0 0
      %534 = vmatpush1.bf16.msra.mxu0 0
      %535 = vmatprep.subr.bf16.mxu0 0
      %536 = vmatpush1.bf16.msra.mxu0 0
      %537 = vmatprep.subr.bf16.mxu0 0
      %538 = vmatpush1.bf16.msra.mxu0 0
      %539 = vmatprep.subr.bf16.mxu0 0
      %540 = vmatpush1.bf16.msra.mxu0 0
      %541 = vmatprep.subr.bf16.mxu0 0
      %542 = vmatpush1.bf16.msra.mxu0 0
      %543 = vmatprep.subr.bf16.mxu0 0
      %544 = vmatpush1.bf16.msra.mxu0 0
      %545 = vmatprep.subr.bf16.mxu0 0
      %546 = vmatpush1.bf16.msra.mxu0 0
      %547 = vmatprep.subr.bf16.mxu0 0
      %548 = vmatpush1.bf16.msra.mxu0 0
      %549 = vmatprep.mubr.bf16.mxu0 0
      %550 = vmatmul.mubr.bf16.gmra.mrb[0].mxu0 %v512
      %v551 = vpop.f32.mrb[0].mxu0
      %v552 = vadd.f32 0.0, %v551
      %v553 = vpop.f32.mrb[0].mxu0
      %v554 = vpop.f32.mrb[0].mxu0
      %v555 = vadd.f32 0.0, %v554
      %v556 = vpop.f32.mrb[0].mxu0
      %557 = vdwg.mxu0
      %v559 = vsel %vm365, %v500, 0
      %561 = vmatprep.subr.mxu0 0.0
      %562 = vmatpush1.msra.mxu0 %v270
      %563 = vmatprep.subr.mxu0 0.0
      %564 = vmatpush1.msra.mxu0 %v271
      %565 = vmatprep.subr.mxu0 0.0
      %566 = vmatpush1.msra.mxu0 %v272
      %567 = vmatprep.subr.mxu0 0.0
      %568 = vmatpush1.msra.mxu0 0.0
      %569 = vmatprep.subr.mxu0 0.0
      %570 = vmatpush1.msra.mxu0 0.0
      %571 = vmatprep.subr.mxu0 0.0
      %572 = vmatpush1.msra.mxu0 0.0
      %573 = vmatprep.subr.mxu0 0.0
      %574 = vmatpush1.msra.mxu0 0.0
      %575 = vmatprep.subr.mxu0 0.0
      %576 = vmatpush1.msra.mxu0 0.0
      %577 = vmatprep.subr.mxu0 0.0
      %578 = vmatpush1.msra.mxu0 0.0
      %579 = vmatprep.subr.mxu0 0.0
      %580 = vmatpush1.msra.mxu0 0.0
      %581 = vmatprep.subr.mxu0 0.0
      %582 = vmatpush1.msra.mxu0 0.0
      %583 = vmatprep.subr.mxu0 0.0
      %584 = vmatpush1.msra.mxu0 0.0
      %585 = vmatprep.subr.mxu0 0.0
      %586 = vmatpush1.msra.mxu0 0.0
      %587 = vmatprep.subr.mxu0 0.0
      %588 = vmatpush1.msra.mxu0 0.0
      %589 = vmatprep.subr.mxu0 0.0
      %590 = vmatpush1.msra.mxu0 0.0
      %591 = vmatprep.subr.mxu0 0.0
      %592 = vmatpush1.msra.mxu0 0.0
      %593 = vmatprep.subr.mxu0 0.0
      %594 = vmatpush1.msra.mxu0 0.0
      %595 = vmatprep.subr.mxu0 0.0
      %596 = vmatpush1.msra.mxu0 0.0
      %597 = vmatprep.subr.mxu0 0.0
      %598 = vmatpush1.msra.mxu0 0.0
      %599 = vmatprep.subr.mxu0 0.0
      %600 = vmatpush1.msra.mxu0 0.0
      %601 = vmatprep.subr.mxu0 0.0
      %602 = vmatpush1.msra.mxu0 0.0
      %603 = vmatprep.subr.mxu0 0.0
      %604 = vmatpush1.msra.mxu0 0.0
      %605 = vmatprep.subr.mxu0 0.0
      %606 = vmatpush1.msra.mxu0 0.0
      %607 = vmatprep.subr.mxu0 0.0
      %608 = vmatpush1.msra.mxu0 0.0
      %609 = vmatprep.subr.mxu0 0.0
      %610 = vmatpush1.msra.mxu0 0.0
      %611 = vmatprep.subr.mxu0 0.0
      %612 = vmatpush1.msra.mxu0 0.0
      %613 = vmatprep.subr.mxu0 0.0
      %614 = vmatpush1.msra.mxu0 0.0
      %615 = vmatprep.subr.mxu0 0.0
      %616 = vmatpush1.msra.mxu0 0.0
      %617 = vmatprep.subr.mxu0 0.0
      %618 = vmatpush1.msra.mxu0 0.0
      %619 = vmatprep.subr.mxu0 0.0
      %620 = vmatpush1.msra.mxu0 0.0
      %621 = vmatprep.subr.mxu0 0.0
      %622 = vmatpush1.msra.mxu0 0.0
      %623 = vmatprep.subr.mxu0 0.0
      %624 = vmatpush1.msra.mxu0 0.0
      %625 = vmatprep.mubr.f32.mxu0 0.0
      %626 = vmatmul.mubr.f32.gmra.mrb[0].mxu0 %v559
      %v627 = vpop.f32.mrb[0].mxu0
      %v628 = vadd.f32 0.0, %v627
      %v629 = vpop.f32.mrb[0].mxu0
      %630 = vdwg.mxu0
      %v631 = vpack.c.bf16 %v628, %v628
      %v633 = vsel %vm365, %v552, 0
      %v636 = vsel %vm365, %v555, 0
      %638 = vmatprep.subr.mxu0 0.0
      %639 = vmatpush1.msra.mxu0 %v273
      %640 = vmatprep.subr.mxu0 0.0
      %641 = vmatpush1.msra.mxu0 %v274
      %642 = vmatprep.subr.mxu0 0.0
      %643 = vmatpush1.msra.mxu0 %v275
      %644 = vmatprep.subr.mxu0 0.0
      %645 = vmatpush1.msra.mxu0 0.0
      %646 = vmatprep.subr.mxu0 0.0
      %647 = vmatpush1.msra.mxu0 0.0
      %648 = vmatprep.subr.mxu0 0.0
      %649 = vmatpush1.msra.mxu0 0.0
      %650 = vmatprep.subr.mxu0 0.0
      %651 = vmatpush1.msra.mxu0 0.0
      %652 = vmatprep.subr.mxu0 0.0
      %653 = vmatpush1.msra.mxu0 0.0
      %654 = vmatprep.subr.mxu0 0.0
      %655 = vmatpush1.msra.mxu0 0.0
      %656 = vmatprep.subr.mxu0 0.0
      %657 = vmatpush1.msra.mxu0 0.0
      %658 = vmatprep.subr.mxu0 0.0
      %659 = vmatpush1.msra.mxu0 0.0
      %660 = vmatprep.subr.mxu0 0.0
      %661 = vmatpush1.msra.mxu0 0.0
      %662 = vmatprep.subr.mxu0 0.0
      %663 = vmatpush1.msra.mxu0 0.0
      %664 = vmatprep.subr.mxu0 0.0
      %665 = vmatpush1.msra.mxu0 0.0
      %666 = vmatprep.subr.mxu0 0.0
      %667 = vmatpush1.msra.mxu0 0.0
      %668 = vmatprep.subr.mxu0 0.0
      %669 = vmatpush1.msra.mxu0 0.0
      %670 = vmatprep.subr.mxu0 0.0
      %671 = vmatpush1.msra.mxu0 0.0
      %672 = vmatprep.subr.mxu0 0.0
      %673 = vmatpush1.msra.mxu0 0.0
      %674 = vmatprep.subr.mxu0 0.0
      %675 = vmatpush1.msra.mxu0 0.0
      %676 = vmatprep.subr.mxu0 0.0
      %677 = vmatpush1.msra.mxu0 0.0
      %678 = vmatprep.subr.mxu0 0.0
      %679 = vmatpush1.msra.mxu0 0.0
      %680 = vmatprep.subr.mxu0 0.0
      %681 = vmatpush1.msra.mxu0 0.0
      %682 = vmatprep.subr.mxu0 0.0
      %683 = vmatpush1.msra.mxu0 0.0
      %684 = vmatprep.subr.mxu0 0.0
      %685 = vmatpush1.msra.mxu0 0.0
      %686 = vmatprep.subr.mxu0 0.0
      %687 = vmatpush1.msra.mxu0 0.0
      %688 = vmatprep.subr.mxu0 0.0
      %689 = vmatpush1.msra.mxu0 0.0
      %690 = vmatprep.subr.mxu0 0.0
      %691 = vmatpush1.msra.mxu0 0.0
      %692 = vmatprep.subr.mxu0 0.0
      %693 = vmatpush1.msra.mxu0 0.0
      %694 = vmatprep.subr.mxu0 0.0
      %695 = vmatpush1.msra.mxu0 0.0
      %696 = vmatprep.subr.mxu0 0.0
      %697 = vmatpush1.msra.mxu0 0.0
      %698 = vmatprep.subr.mxu0 0.0
      %699 = vmatpush1.msra.mxu0 0.0
      %700 = vmatprep.subr.mxu0 0.0
      %701 = vmatpush1.msra.mxu0 0.0
      %702 = vmatprep.mubr.f32.mxu0 0.0
      %703 = vmatmul.mubr.f32.gmra.mrb[0].mxu0 %v633
      %v704 = vpop.f32.mrb[0].mxu0
      %v705 = vadd.f32 0.0, %v704
      %v706 = vpop.f32.mrb[0].mxu0
      %707 = vmatprep.mubr.f32.mxu0 0.0
      %708 = vmatmul.mubr.f32.gmra.mrb[0].mxu0 %v636
      %v709 = vpop.f32.mrb[0].mxu0
      %v710 = vadd.f32 0.0, %v709
      %v711 = vpop.f32.mrb[0].mxu0
      %712 = vdwg.mxu0
      %v715 = vunpack.c.l.b16 %v260
      %v716 = vunpack.c.l.b16 %v261
      %v717 = vpack.c.b16 %v716, %v715
      %v719 = vsel %vm457, %v717, 0
      %v722 = vsel %vm461, %v631, 0
      %724 = vmatprep.subr.bf16.mxu0 0
      %725 = vmatpush1.bf16.msra.mxu0 %v722
      %726 = vmatprep.subr.bf16.mxu0 0
      %727 = vmatpush1.bf16.msra.mxu0 0
      %728 = vmatprep.subr.bf16.mxu0 0
      %729 = vmatpush1.bf16.msra.mxu0 0
      %730 = vmatprep.subr.bf16.mxu0 0
      %731 = vmatpush1.bf16.msra.mxu0 0
      %732 = vmatprep.subr.bf16.mxu0 0
      %733 = vmatpush1.bf16.msra.mxu0 0
      %734 = vmatprep.subr.bf16.mxu0 0
      %735 = vmatpush1.bf16.msra.mxu0 0
      %736 = vmatprep.subr.bf16.mxu0 0
      %737 = vmatpush1.bf16.msra.mxu0 0
      %738 = vmatprep.subr.bf16.mxu0 0
      %739 = vmatpush1.bf16.msra.mxu0 0
      %740 = vmatprep.subr.bf16.mxu0 0
      %741 = vmatpush1.bf16.msra.mxu0 0
      %742 = vmatprep.subr.bf16.mxu0 0
      %743 = vmatpush1.bf16.msra.mxu0 0
      %744 = vmatprep.subr.bf16.mxu0 0
      %745 = vmatpush1.bf16.msra.mxu0 0
      %746 = vmatprep.subr.bf16.mxu0 0
      %747 = vmatpush1.bf16.msra.mxu0 0
      %748 = vmatprep.subr.bf16.mxu0 0
      %749 = vmatpush1.bf16.msra.mxu0 0
      %750 = vmatprep.subr.bf16.mxu0 0
      %751 = vmatpush1.bf16.msra.mxu0 0
      %752 = vmatprep.subr.bf16.mxu0 0
      %753 = vmatpush1.bf16.msra.mxu0 0
      %754 = vmatprep.subr.bf16.mxu0 0
      %755 = vmatpush1.bf16.msra.mxu0 0
      %756 = vmatprep.mubr.bf16.mxu0 0
      %757 = vmatmul.mubr.bf16.gmra.mrb[0].mxu0 %v719
      %v758 = vpop.f32.mrb[0].mxu0
      %v759 = vadd.f32 %v705, %v758
      %v760 = vpop.f32.mrb[0].mxu0
      %v761 = vpop.f32.mrb[0].mxu0
      %v762 = vadd.f32 %v710, %v761
      %v763 = vpop.f32.mrb[0].mxu0
      %764 = vdwg.mxu0
      %v765 = vadd.f32 %v759, %v439
      %v766 = vadd.f32 %v762, %v444
      %vm767 = vcmp.gt.f32.partialorder %v765, 0.0
      %vm768 = vcmp.gt.f32.partialorder %v766, 0.0
      %v769 = vmul.f32 %v765, 0.2
      %v770 = vmul.f32 %v766, 0.2
      %v771 = vsel %vm767, %v765, %v769
      %v772 = vsel %vm768, %v766, %v770
      %v773 = vunpack.c.l.bf16 %v260
      %v774 = vunpack.c.l.bf16 %v261
      %776 = vset.pattern.permute.xlu0 0
      %777 = vperm.xlu0 %776, %v771
      %v778 = vpop.permute.xlu0 %777
      %781 = vset.pattern.permute.xlu0 0
      %782 = vperm.xlu0 %781, %v772
      %v783 = vpop.permute.xlu0 %782
      %v785 = vmul.f32 %v778, %v773
      %v786 = vmul.f32 %v783, %v774
      %v787 = vunpack.c.l.bf16 %v264
      %v788 = vunpack.c.l.bf16 %v265
      %v789 = vadd.f32 %v785, %v787
      %v790 = vadd.f32 %v786, %v788
      %v791 = vsel %vm457, %v789, -inf
      %v792 = vsel %vm457, %v790, -inf
      %v793 = vmax.f32 %v791, %v792
      %v794 = vrot.slane %v793, 4
      %v795 = vmax.f32 %v793, %v794
      %v796 = vrot.slane %v795, 2
      %v797 = vmax.f32 %v795, %v796
      %v798 = vrot.slane %v797, 1
      %v799 = vmax.f32 %v797, %v798
      %800 = vset.pattern.permute.xlu0 1
      %801 = vperm.xlu0 %800, %v771
      %v802 = vpop.permute.xlu0 %801
      %804 = vset.pattern.permute.xlu0 1
      %805 = vperm.xlu0 %804, %v772
      %v806 = vpop.permute.xlu0 %805
      %v808 = vmul.f32 %v802, %v773
      %v809 = vmul.f32 %v806, %v774
      %v810 = vadd.f32 %v808, %v787
      %v811 = vadd.f32 %v809, %v788
      %v812 = vsel %vm457, %v810, -inf
      %v813 = vsel %vm457, %v811, -inf
      %v814 = vmax.f32 %v812, %v813
      %v815 = vrot.slane %v814, 4
      %v816 = vmax.f32 %v814, %v815
      %v817 = vrot.slane %v816, 2
      %v818 = vmax.f32 %v816, %v817
      %v819 = vrot.slane %v818, 1
      %v820 = vmax.f32 %v818, %v819
      %821 = vset.pattern.permute.xlu0 2
      %822 = vperm.xlu0 %821, %v771
      %v823 = vpop.permute.xlu0 %822
      %825 = vset.pattern.permute.xlu0 2
      %826 = vperm.xlu0 %825, %v772
      %v827 = vpop.permute.xlu0 %826
      %v829 = vmul.f32 %v823, %v773
      %v830 = vmul.f32 %v827, %v774
      %v831 = vadd.f32 %v829, %v787
      %v832 = vadd.f32 %v830, %v788
      %v833 = vsel %vm457, %v831, -inf
      %v834 = vsel %vm457, %v832, -inf
      %v835 = vmax.f32 %v833, %v834
      %v836 = vrot.slane %v835, 4
      %v837 = vmax.f32 %v835, %v836
      %v838 = vrot.slane %v837, 2
      %v839 = vmax.f32 %v837, %v838
      %v840 = vrot.slane %v839, 1
      %v841 = vmax.f32 %v839, %v840
      %vm842 = vcmask 1040384
      %v843 = vsel %vm842, %v799, %v820
      %vm844 = vcmask 1041408
      %v845 = vsel %vm844, %v843, %v841
      %v846 = vpack.c.bf16 %v845, %v845
      %v848 = vsel %vm457, %v846, 0
      %850 = vmatprep.subr.bf16.mxu0 0
      %851 = vmatpush1.bf16.xpose.msra.mxu0 %v848
      %852 = vmatprep.subr.bf16.mxu0 0
      %853 = vmatpush1.bf16.xpose.msra.mxu0 0
      %854 = vmatprep.subr.bf16.mxu0 0
      %855 = vmatpush1.bf16.xpose.msra.mxu0 0
      %856 = vmatprep.subr.bf16.mxu0 0
      %857 = vmatpush1.bf16.xpose.msra.mxu0 0
      %858 = vmatprep.subr.bf16.mxu0 0
      %859 = vmatpush1.bf16.xpose.msra.mxu0 0
      %860 = vmatprep.subr.bf16.mxu0 0
      %861 = vmatpush1.bf16.xpose.msra.mxu0 0
      %862 = vmatprep.subr.bf16.mxu0 0
      %863 = vmatpush1.bf16.xpose.msra.mxu0 0
      %864 = vmatprep.subr.bf16.mxu0 0
      %865 = vmatpush1.bf16.xpose.msra.mxu0 0
      %866 = vmatprep.subr.bf16.mxu0 0
      %867 = vmatpush1.bf16.xpose.msra.mxu0 0
      %868 = vmatprep.subr.bf16.mxu0 0
      %869 = vmatpush1.bf16.xpose.msra.mxu0 0
      %870 = vmatprep.subr.bf16.mxu0 0
      %871 = vmatpush1.bf16.xpose.msra.mxu0 0
      %872 = vmatprep.subr.bf16.mxu0 0
      %873 = vmatpush1.bf16.xpose.msra.mxu0 0
      %874 = vmatprep.subr.bf16.mxu0 0
      %875 = vmatpush1.bf16.xpose.msra.mxu0 0
      %876 = vmatprep.subr.bf16.mxu0 0
      %877 = vmatpush1.bf16.xpose.msra.mxu0 0
      %878 = vmatprep.subr.bf16.mxu0 0
      %879 = vmatpush1.bf16.xpose.msra.mxu0 0
      %880 = vmatprep.subr.bf16.mxu0 0
      %881 = vmatpush1.bf16.xpose.msra.mxu0 0
      %882 = vmatprep.mubr.bf16.mxu0 0
      %883 = vmatmul.mubr.bf16.gmra.mrb[0].mxu0 %v719
      %v884 = vpop.f32.mrb[0].mxu0
      %v885 = vadd.f32 0.0, %v884
      %v886 = vpop.f32.mrb[0].mxu0
      %v887 = vpop.f32.mrb[0].mxu0
      %v888 = vadd.f32 0.0, %v887
      %v889 = vpop.f32.mrb[0].mxu0
      %890 = vdwg.mxu0
      %v891 = vsub.f32 %v771, %v885
      %v892 = vsub.f32 %v772, %v888
      %v893 = vmul.f32 %v891, 1.442695
      %v894 = vpow.pop %v893
      %v895 = vmul.f32 %v892, 1.442695
      %v896 = vpow.pop %v895
      %v897 = vpack.c.bf16 %v896, %v894
      %898 = vxpose.xlu0.c.b16.start [1/8] %v897, 128
      %899 = vxpose.xlu0.c.b16.cont [2/8] 0, 128
      %900 = vxpose.xlu0.c.b16.cont [3/8] 0, 128
      %901 = vxpose.xlu0.c.b16.cont [4/8] 0, 128
      %902 = vxpose.xlu0.c.b16.cont [5/8] 0, 128
      %903 = vxpose.xlu0.c.b16.cont [6/8] 0, 128
      %904 = vxpose.xlu0.c.b16.cont [7/8] 0, 128
      %905 = vxpose.xlu0.c.b16.end [8/8] 0, 128
      %v906 = vpop.trf.xlu0
      %v907 = vpop.trf.xlu0
      %v908 = vpop.trf.xlu0
      %v909 = vpop.trf.xlu0
      %v910 = vpop.trf.xlu0
      %v911 = vpop.trf.xlu0
      %v912 = vpop.trf.xlu0
      %v913 = vpop.trf.xlu0
      %vm915 = vcmask 130048
      %v917 = vsel %vm915, %v906, 0
      %919 = vmatprep.subr.bf16.mxu0 0
      %920 = vmatpush1.bf16.msra.mxu0 %v717
      %921 = vmatprep.subr.bf16.mxu0 0
      %922 = vmatpush1.bf16.msra.mxu0 0
      %923 = vmatprep.subr.bf16.mxu0 0
      %924 = vmatpush1.bf16.msra.mxu0 0
      %925 = vmatprep.subr.bf16.mxu0 0
      %926 = vmatpush1.bf16.msra.mxu0 0
      %927 = vmatprep.subr.bf16.mxu0 0
      %928 = vmatpush1.bf16.msra.mxu0 0
      %929 = vmatprep.subr.bf16.mxu0 0
      %930 = vmatpush1.bf16.msra.mxu0 0
      %931 = vmatprep.subr.bf16.mxu0 0
      %932 = vmatpush1.bf16.msra.mxu0 0
      %933 = vmatprep.subr.bf16.mxu0 0
      %934 = vmatpush1.bf16.msra.mxu0 0
      %935 = vmatprep.subr.bf16.mxu0 0
      %936 = vmatpush1.bf16.msra.mxu0 0
      %937 = vmatprep.subr.bf16.mxu0 0
      %938 = vmatpush1.bf16.msra.mxu0 0
      %939 = vmatprep.subr.bf16.mxu0 0
      %940 = vmatpush1.bf16.msra.mxu0 0
      %941 = vmatprep.subr.bf16.mxu0 0
      %942 = vmatpush1.bf16.msra.mxu0 0
      %943 = vmatprep.subr.bf16.mxu0 0
      %944 = vmatpush1.bf16.msra.mxu0 0
      %945 = vmatprep.subr.bf16.mxu0 0
      %946 = vmatpush1.bf16.msra.mxu0 0
      %947 = vmatprep.subr.bf16.mxu0 0
      %948 = vmatpush1.bf16.msra.mxu0 0
      %949 = vmatprep.subr.bf16.mxu0 0
      %950 = vmatpush1.bf16.msra.mxu0 0
      %951 = vmatprep.mubr.bf16.mxu0 0
      %952 = vmatmul.mubr.bf16.gmra.mrb[0].mxu0 %v917
      %v953 = vpop.f32.mrb[0].mxu0
      %v954 = vadd.f32 1e-16, %v953
      %v955 = vpop.f32.mrb[0].mxu0
      %v956 = vpop.f32.mrb[0].mxu0
      %v957 = vpop.f32.mrb[0].mxu0
      %958 = vdwg.mxu0
      %v959 = vrcp.pop %v954
      %v960 = vpack.c.bf16 %v959, %v959
      %v962 = vsel %vm457, %v960, 0
      %964 = vmatprep.subr.bf16.mxu0 0
      %965 = vmatpush1.bf16.xpose.msra.mxu0 %v962
      %966 = vmatprep.subr.bf16.mxu0 0
      %967 = vmatpush1.bf16.xpose.msra.mxu0 0
      %968 = vmatprep.subr.bf16.mxu0 0
      %969 = vmatpush1.bf16.xpose.msra.mxu0 0
      %970 = vmatprep.subr.bf16.mxu0 0
      %971 = vmatpush1.bf16.xpose.msra.mxu0 0
      %972 = vmatprep.subr.bf16.mxu0 0
      %973 = vmatpush1.bf16.xpose.msra.mxu0 0
      %974 = vmatprep.subr.bf16.mxu0 0
      %975 = vmatpush1.bf16.xpose.msra.mxu0 0
      %976 = vmatprep.subr.bf16.mxu0 0
      %977 = vmatpush1.bf16.xpose.msra.mxu0 0
      %978 = vmatprep.subr.bf16.mxu0 0
      %979 = vmatpush1.bf16.xpose.msra.mxu0 0
      %980 = vmatprep.subr.bf16.mxu0 0
      %981 = vmatpush1.bf16.xpose.msra.mxu0 0
      %982 = vmatprep.subr.bf16.mxu0 0
      %983 = vmatpush1.bf16.xpose.msra.mxu0 0
      %984 = vmatprep.subr.bf16.mxu0 0
      %985 = vmatpush1.bf16.xpose.msra.mxu0 0
      %986 = vmatprep.subr.bf16.mxu0 0
      %987 = vmatpush1.bf16.xpose.msra.mxu0 0
      %988 = vmatprep.subr.bf16.mxu0 0
      %989 = vmatpush1.bf16.xpose.msra.mxu0 0
      %990 = vmatprep.subr.bf16.mxu0 0
      %991 = vmatpush1.bf16.xpose.msra.mxu0 0
      %992 = vmatprep.subr.bf16.mxu0 0
      %993 = vmatpush1.bf16.xpose.msra.mxu0 0
      %994 = vmatprep.subr.bf16.mxu0 0
      %995 = vmatpush1.bf16.xpose.msra.mxu0 0
      %996 = vmatprep.mubr.bf16.mxu0 0
      %997 = vmatmul.mubr.bf16.gmra.mrb[0].mxu0 %v719
      %v998 = vpop.f32.mrb[0].mxu0
      %v999 = vadd.f32 0.0, %v998
      %v1000 = vpop.f32.mrb[0].mxu0
      %v1001 = vpop.f32.mrb[0].mxu0
      %v1002 = vadd.f32 0.0, %v1001
      %v1003 = vpop.f32.mrb[0].mxu0
      %1004 = vdwg.mxu0
      %v1005 = vmul.f32 %v894, %v999
      %v1006 = vmul.f32 %v896, %v1002
      %v1007 = vpack.c.bf16 %v1006, %v1005
      %vm1008 = vcmask 23552
      %v1010 = vsel %vm1008, %v1007, 0
      %v1012 = vsel %vm842, 4294967295, 65535
      %v1013 = vsel %vm844, %v1012, 0
      %v1015 = vand.u32 %v276, %v1013
      %1017 = vmatprep.subr.bf16.mxu0 0
      %1018 = vmatpush1.bf16.msra.mxu0 %v1015
      %1019 = vmatprep.subr.bf16.mxu0 0
      %1020 = vmatpush1.bf16.msra.mxu0 0
      %1021 = vmatprep.subr.bf16.mxu0 0
      %1022 = vmatpush1.bf16.msra.mxu0 0
      %1023 = vmatprep.subr.bf16.mxu0 0
      %1024 = vmatpush1.bf16.msra.mxu0 0
      %1025 = vmatprep.subr.bf16.mxu0 0
      %1026 = vmatpush1.bf16.msra.mxu0 0
      %1027 = vmatprep.subr.bf16.mxu0 0
      %1028 = vmatpush1.bf16.msra.mxu0 0
      %1029 = vmatprep.subr.bf16.mxu0 0
      %1030 = vmatpush1.bf16.msra.mxu0 0
      %1031 = vmatprep.subr.bf16.mxu0 0
      %1032 = vmatpush1.bf16.msra.mxu0 0
      %1033 = vmatprep.subr.bf16.mxu0 0
      %1034 = vmatpush1.bf16.msra.mxu0 0
      %1035 = vmatprep.subr.bf16.mxu0 0
      %1036 = vmatpush1.bf16.msra.mxu0 0
      %1037 = vmatprep.subr.bf16.mxu0 0
      %1038 = vmatpush1.bf16.msra.mxu0 0
      %1039 = vmatprep.subr.bf16.mxu0 0
      %1040 = vmatpush1.bf16.msra.mxu0 0
      %1041 = vmatprep.subr.bf16.mxu0 0
      %1042 = vmatpush1.bf16.msra.mxu0 0
      %1043 = vmatprep.subr.bf16.mxu0 0
      %1044 = vmatpush1.bf16.msra.mxu0 0
      %1045 = vmatprep.subr.bf16.mxu0 0
      %1046 = vmatpush1.bf16.msra.mxu0 0
      %1047 = vmatprep.subr.bf16.mxu0 0
      %1048 = vmatpush1.bf16.msra.mxu0 0
      %1049 = vmatprep.mubr.bf16.mxu0 0
      %1050 = vmatmul.mubr.bf16.gmra.mrb[0].mxu0 %v1010
      %v1051 = vpop.f32.mrb[0].mxu0
      %v1052 = vadd.f32 0.0, %v1051
      %v1053 = vpop.f32.mrb[0].mxu0
      %v1054 = vpop.f32.mrb[0].mxu0
      %v1055 = vadd.f32 0.0, %v1054
      %v1056 = vpop.f32.mrb[0].mxu0
      %1057 = vdwg.mxu0
      %v1058 = vmul.f32 %v1052, %v356
      %v1059 = vmul.f32 %v1055, %v359
      %v1060 = vmul.f32 %v1058, %v552
      %v1061 = vmul.f32 %v1059, %v555
      %v1062 = vpack.c.bf16 %v1061, %v1060
      %1063 = vxpose.xlu0.c.b16.start [1/8] %v717, 128
      %1064 = vxpose.xlu0.c.b16.cont [2/8] 0, 128
      %1065 = vxpose.xlu0.c.b16.cont [3/8] 0, 128
      %1066 = vxpose.xlu0.c.b16.cont [4/8] 0, 128
      %1067 = vxpose.xlu0.c.b16.cont [5/8] 0, 128
      %1068 = vxpose.xlu0.c.b16.cont [6/8] 0, 128
      %1069 = vxpose.xlu0.c.b16.cont [7/8] 0, 128
      %1070 = vxpose.xlu0.c.b16.end [8/8] 0, 128
      %v1071 = vpop.trf.xlu0
      %v1072 = vpop.trf.xlu0
      %v1073 = vpop.trf.xlu0
      %v1074 = vpop.trf.xlu0
      %v1075 = vpop.trf.xlu0
      %v1076 = vpop.trf.xlu0
      %v1077 = vpop.trf.xlu0
      %v1078 = vpop.trf.xlu0
      %v1080 = vsel %vm915, %v1071, 0
      %1082 = vmatprep.subr.bf16.mxu0 0
      %1083 = vmatpush1.bf16.msra.mxu0 %v1062
      %1084 = vmatprep.subr.bf16.mxu0 0
      %1085 = vmatpush1.bf16.msra.mxu0 0
      %1086 = vmatprep.subr.bf16.mxu0 0
      %1087 = vmatpush1.bf16.msra.mxu0 0
      %1088 = vmatprep.subr.bf16.mxu0 0
      %1089 = vmatpush1.bf16.msra.mxu0 0
      %1090 = vmatprep.subr.bf16.mxu0 0
      %1091 = vmatpush1.bf16.msra.mxu0 0
      %1092 = vmatprep.subr.bf16.mxu0 0
      %1093 = vmatpush1.bf16.msra.mxu0 0
      %1094 = vmatprep.subr.bf16.mxu0 0
      %1095 = vmatpush1.bf16.msra.mxu0 0
      %1096 = vmatprep.subr.bf16.mxu0 0
      %1097 = vmatpush1.bf16.msra.mxu0 0
      %1098 = vmatprep.subr.bf16.mxu0 0
      %1099 = vmatpush1.bf16.msra.mxu0 0
      %1100 = vmatprep.subr.bf16.mxu0 0
      %1101 = vmatpush1.bf16.msra.mxu0 0
      %1102 = vmatprep.subr.bf16.mxu0 0
      %1103 = vmatpush1.bf16.msra.mxu0 0
      %1104 = vmatprep.subr.bf16.mxu0 0
      %1105 = vmatpush1.bf16.msra.mxu0 0
      %1106 = vmatprep.subr.bf16.mxu0 0
      %1107 = vmatpush1.bf16.msra.mxu0 0
      %1108 = vmatprep.subr.bf16.mxu0 0
      %1109 = vmatpush1.bf16.msra.mxu0 0
      %1110 = vmatprep.subr.bf16.mxu0 0
      %1111 = vmatpush1.bf16.msra.mxu0 0
      %1112 = vmatprep.subr.bf16.mxu0 0
      %1113 = vmatpush1.bf16.msra.mxu0 0
      %1114 = vmatprep.mubr.bf16.mxu0 0
      %1115 = vmatmul.mubr.bf16.gmra.mrb[0].mxu0 %v1080
      %v1116 = vpop.f32.mrb[0].mxu0
      %v1117 = vadd.f32 0.0, %v1116
      %v1118 = vpop.f32.mrb[0].mxu0
      %v1119 = vpop.f32.mrb[0].mxu0
      %v1120 = vpop.f32.mrb[0].mxu0
      %1121 = vdwg.mxu0
      %v1122 = vpack.c.bf16 %v1117, %v1117
      %v1126 = vunpack.c.l.b16 %v267
      %v1127 = vunpack.c.l.b16 %v268
      %v1128 = vunpack.c.l.b16 %v269
      %v1129 = vpack.c.b16 %v1127, %v1126
      %v1130 = vpack.c.b16 %v1128, %v1128
      %v1133 = vsel %vm365, %v1122, 0
      %v1136 = vsel %vm461, %v1130, 0
      %1138 = vmatprep.subr.bf16.mxu0 0
      %1139 = vmatpush1.bf16.msra.mxu0 %v1129
      %1140 = vmatprep.subr.bf16.mxu0 0
      %1141 = vmatpush1.bf16.msra.mxu0 %v1136
      %1142 = vmatprep.subr.bf16.mxu0 0
      %1143 = vmatpush1.bf16.msra.mxu0 0
      %1144 = vmatprep.subr.bf16.mxu0 0
      %1145 = vmatpush1.bf16.msra.mxu0 0
      %1146 = vmatprep.subr.bf16.mxu0 0
      %1147 = vmatpush1.bf16.msra.mxu0 0
      %1148 = vmatprep.subr.bf16.mxu0 0
      %1149 = vmatpush1.bf16.msra.mxu0 0
      %1150 = vmatprep.subr.bf16.mxu0 0
      %1151 = vmatpush1.bf16.msra.mxu0 0
      %1152 = vmatprep.subr.bf16.mxu0 0
      %1153 = vmatpush1.bf16.msra.mxu0 0
      %1154 = vmatprep.subr.bf16.mxu0 0
      %1155 = vmatpush1.bf16.msra.mxu0 0
      %1156 = vmatprep.subr.bf16.mxu0 0
      %1157 = vmatpush1.bf16.msra.mxu0 0
      %1158 = vmatprep.subr.bf16.mxu0 0
      %1159 = vmatpush1.bf16.msra.mxu0 0
      %1160 = vmatprep.subr.bf16.mxu0 0
      %1161 = vmatpush1.bf16.msra.mxu0 0
      %1162 = vmatprep.subr.bf16.mxu0 0
      %1163 = vmatpush1.bf16.msra.mxu0 0
      %1164 = vmatprep.subr.bf16.mxu0 0
      %1165 = vmatpush1.bf16.msra.mxu0 0
      %1166 = vmatprep.subr.bf16.mxu0 0
      %1167 = vmatpush1.bf16.msra.mxu0 0
      %1168 = vmatprep.subr.bf16.mxu0 0
      %1169 = vmatpush1.bf16.msra.mxu0 0
      %1170 = vmatprep.mubr.bf16.mxu0 0
      %1171 = vmatmul.mubr.bf16.gmra.mrb[0].mxu0 %v1133
      %v1172 = vpop.f32.mrb[0].mxu0
      %v1173 = vadd.f32 %v284, %v1172
      %v1174 = vpop.f32.mrb[0].mxu0
      %v1175 = vpop.f32.mrb[0].mxu0
      %v1176 = vpop.f32.mrb[0].mxu0
      %1177 = vdwg.mxu0
      %v1178 = vmax.f32 %v1173, 0.0
      %v1179 = vmin.f32 %v1173, 0.0
      %v1180 = vmul.f32 %v1179, 1.442695
      %v1181 = vpow.pop %v1180
      %v1182 = vadd.f32 %v1178, %v1181
      %v1183 = vsub.f32 %v1182, 1.0
      %1185 = vrot.lane.b32.xlu0 %v455, 8
      %v1186 = vpop.permute.xlu0 %1185
      %v1188 = vsel %vm457, %v1183, %v1186
      %v1189 = vpack.c.bf16 %v1188, %v1188
      %v1192 = vunpack.c.l.b16 %v277
      %v1193 = vunpack.c.l.b16 %v278
      %v1194 = vpack.c.b16 %v1193, %v1192
      %v1197 = vsel %vm915, %v1189, 0
      %1199 = vmatprep.subr.bf16.mxu0 0
      %1200 = vmatpush1.bf16.msra.mxu0 %v1194
      %1201 = vmatprep.subr.bf16.mxu0 0
      %1202 = vmatpush1.bf16.msra.mxu0 0
      %1203 = vmatprep.subr.bf16.mxu0 0
      %1204 = vmatpush1.bf16.msra.mxu0 0
      %1205 = vmatprep.subr.bf16.mxu0 0
      %1206 = vmatpush1.bf16.msra.mxu0 0
      %1207 = vmatprep.subr.bf16.mxu0 0
      %1208 = vmatpush1.bf16.msra.mxu0 0
      %1209 = vmatprep.subr.bf16.mxu0 0
      %1210 = vmatpush1.bf16.msra.mxu0 0
      %1211 = vmatprep.subr.bf16.mxu0 0
      %1212 = vmatpush1.bf16.msra.mxu0 0
      %1213 = vmatprep.subr.bf16.mxu0 0
      %1214 = vmatpush1.bf16.msra.mxu0 0
      %1215 = vmatprep.subr.bf16.mxu0 0
      %1216 = vmatpush1.bf16.msra.mxu0 0
      %1217 = vmatprep.subr.bf16.mxu0 0
      %1218 = vmatpush1.bf16.msra.mxu0 0
      %1219 = vmatprep.subr.bf16.mxu0 0
      %1220 = vmatpush1.bf16.msra.mxu0 0
      %1221 = vmatprep.subr.bf16.mxu0 0
      %1222 = vmatpush1.bf16.msra.mxu0 0
      %1223 = vmatprep.subr.bf16.mxu0 0
      %1224 = vmatpush1.bf16.msra.mxu0 0
      %1225 = vmatprep.subr.bf16.mxu0 0
      %1226 = vmatpush1.bf16.msra.mxu0 0
      %1227 = vmatprep.subr.bf16.mxu0 0
      %1228 = vmatpush1.bf16.msra.mxu0 0
      %1229 = vmatprep.subr.bf16.mxu0 0
      %1230 = vmatpush1.bf16.msra.mxu0 0
      %1231 = vmatprep.mubr.bf16.mxu0 0
      %1232 = vmatmul.mubr.bf16.gmra.mrb[0].mxu0 %v1197
      %v1233 = vpop.f32.mrb[0].mxu0
      %v1234 = vadd.f32 %v291, %v1233
      %v1235 = vpop.f32.mrb[0].mxu0
      %v1236 = vpop.f32.mrb[0].mxu0
      %v1237 = vpop.f32.mrb[0].mxu0
      %1238 = vdwg.mxu0
      %1240 = vrot.lane.b32.xlu0 %v1234, 104
      %v1241 = vpop.permute.xlu0 %1240
      %v1243 = vadd.f32 %v1234, %v1241
      %v1244 = vxor.u32 %v1243, 2147483648
      %v1245 = vmul.f32 %v1244, 1.442695
      %v1246 = vpow.pop %v1245
      %v1247 = vadd.f32 %v1246, 1.0
      %v1248 = vrcp.pop %v1247
      %v1249 = vmul.f32 1.0, %v1248
      %1250 = vrot.lane.b32.xlu0 %v1234, 88
      %v1251 = vpop.permute.xlu0 %1250
      %v1253 = vmul.f32 %v1249, %v1251
      %1255 = vrot.lane.b32.xlu0 %v1253, 16
      %v1256 = vpop.permute.xlu0 %1255
      %v1258 = vadd.f32 %v1234, %v1256
      %v1259 = vtanh.pop %v1258
      %v1260 = vsub.f32 1.0, %v1249
      %1262 = vrot.lane.b32.xlu0 %v1259, 120
      %v1263 = vpop.permute.xlu0 %1262
      %v1265 = vmul.f32 %v1260, %v1263
      %v1266 = vmul.f32 %v1249, %v1186
      %v1267 = vadd.f32 %v1265, %v1266
      %1269 = vrot.lane.b32.xlu0 %v1267, 120
      %v1270 = vpop.permute.xlu0 %1269
      %v1272 = vsel %vm457, %v1270, 0.0
      %1273 = vadd.xlane.f32.xlu0 %v1272
      %v1274 = vpop.xlane.xlu0 %1273
      %v1275 = vrcp.pop 8.0
      %v1276 = vmul.f32 %v1274, %v1275
      %v1277 = vsub.f32 %v1267, %v1276
      %v1278 = vmul.f32 %v1277, %v1277
      %1280 = vrot.lane.b32.xlu0 %v1278, 120
      %v1281 = vpop.permute.xlu0 %1280
      %v1283 = vsel %vm457, %v1281, 0.0
      %1284 = vadd.xlane.f32.xlu0 %v1283
      %v1285 = vpop.xlane.xlu0 %1284
      %v1286 = vmul.f32 %v1285, %v1275
      %v1287 = vadd.f32 %v1286, 1e-05
      %v1288 = vrsqrt.pop %v1287
      %v1289 = vmul.f32 %v1277, %v1288
      %1290 = vrot.lane.b32.xlu0 %v298, 8
      %v1291 = vpop.permute.xlu0 %1290
      %v1293 = vmul.f32 %v1289, %v1291
      %1294 = vrot.lane.b32.xlu0 %v304, 8
      %v1295 = vpop.permute.xlu0 %1294
      %v1297 = vadd.f32 %v1293, %v1295
      %1299 = vrot.lane.b32.xlu0 %v1297, 120
      %v1300 = vpop.permute.xlu0 %1299
    $region134: #{tpu_custom_call.1} parent=1 // loop_footer
      %s453 = sadd.s32 1, %s449
    $region135: #{tpu_custom_call.1} parent=1 // loop_footer_branch
      %448 = sbr.rel target = $region131
    $region136: #{tpu_custom_call.1} parent=1 // loop_exit
      _
    %vm1302 = vcmask 64512
    %1303 = vst.msk [vmem:[#allocation28] sm:$0xff] %vm1302, %v454
    // Predicated region
    $region137: #{tpu_custom_call.1} parent=1 // pred_check
      _
    $region138: #{tpu_custom_call.1} parent=1 // pred_check_branch
      %1305 = sbr.rel (0) target = $region140
    $region139: #{tpu_custom_call.1} parent=1 // pred_region
      %s1307 = ssub.s32 128, 128
      %1308 = vsyncadd [#allocation4], %s1307
      %s1310 = sshll.u32 [#allocation28], 4
      %s1311 = int_to_ptr.vmem [resolvable:$true] %s1310
      %1313 = dma.vmem_to_hbm [thread:$0]  %s1311, 128, %s16, [#allocation4]
    $region140: #{tpu_custom_call.1} parent=1 // pred_fallthru
      _
    // Predicated region
    $region141: #{tpu_custom_call.1} parent=1 // pred_check
      _
    $region142: #{tpu_custom_call.1} parent=1 // pred_check_branch
      %1315 = sbr.rel (0) target = $region144
    $region143: #{tpu_custom_call.1} parent=1 // pred_region
      %1316 = dma.done [#allocation4], 128
    $region144: #{tpu_custom_call.1} parent=1 // pred_fallthru
      _
    %1317 = vsyncpa [#allocation3], 1
    %1318 = vsyncpa [#allocation6], 1
    %1319 = vsyncpa [#allocation9], 1
    %1320 = vsyncpa [#allocation12], 1
    %1321 = vsyncpa [#allocation15], 1
    %1322 = vsyncpa [#allocation18], 1
    %1323 = vsyncpa [#allocation21], 1
    %1324 = vsyncpa [#allocation24], 1
    %1325 = vsyncpa [#allocation27], 1
    %1326 = vsyncpa [#allocation4], 1

</llo_original>
